<compile_context>
chip_gen: v6e
topology: v6e:2x2x1
jax: 0.10.0
libtpu: 0.0.40
codegen_flags: <defaults>
</compile_context>

<pallas_src>
import functools

import jax
import jax.numpy as jnp
from jax.experimental import pallas as pl
from jax.experimental.pallas import tpu as pltpu

# F.rrelu defaults lower=1/8, upper=1/3, training=False -> leaky relu slope:
RRELU_SLOPE = (1.0 / 8.0 + 1.0 / 3.0) / 2.0


def _round_up(x, m):
    return ((x + m - 1) // m) * m


def _rgcn_layer_kernel(*refs, comp, self_loop, skip_connect, slope):
    refs = list(refs)
    src_ref, typ_ref, dst_ref, hg_ref, rel_ref, norm_ref, wn_ref = refs[:7]
    idx = 7
    if self_loop:
        h_ref, wl_ref = refs[idx], refs[idx + 1]
        idx += 2
    if skip_connect:
        prev_ref, wsk_ref, bsk_ref = refs[idx], refs[idx + 1], refs[idx + 2]
        idx += 3
    out_ref = refs[idx]
    acc_ref = refs[idx + 1]

    n = pl.program_id(0)            # destination-node block (parallel axis)
    e = pl.program_id(1)            # edge block (reduction axis)
    num_e = pl.num_programs(1)

    te = src_ref.shape[0]
    np_ = hg_ref.shape[0]
    rp = rel_ref.shape[0]
    tn = acc_ref.shape[0]

    @pl.when(e == 0)
    def _init():
        acc_ref[...] = jnp.zeros_like(acc_ref)

    src = src_ref[...]              # (te, 1) int32
    typ = typ_ref[...]              # (te, 1) int32
    dst = dst_ref[...]              # (te, 1) int32 (-1 on padded edges)

    # --- gather h[src] and rel[typ] via bf16 one-hot matmuls (MXU) ----------
    oh_src = (src == jax.lax.broadcasted_iota(jnp.int32, (te, np_), 1)
              ).astype(jnp.bfloat16)                               # (te, Np)
    oh_typ = (typ == jax.lax.broadcasted_iota(jnp.int32, (te, rp), 1)
              ).astype(jnp.bfloat16)                               # (te, Rp)
    node = jnp.dot(oh_src, hg_ref[...], preferred_element_type=jnp.float32)
    relation = jnp.dot(oh_typ, rel_ref[...], preferred_element_type=jnp.float32)

    # --- compose (W_neighbor is applied AFTER the segment sum) --------------
    if comp == 'sub':
        msg = node + relation       # RE-GCN 'sub' composition is additive
    elif comp == 'mult':
        msg = node * relation
    else:
        raise ValueError(comp)

    # --- scatter-add into this destination-node block -----------------------
    # one-hot in the same (te, tn) orientation; contract over the edge dim.
    iota_dst = jax.lax.broadcasted_iota(jnp.int32, (te, tn), 1) + n * tn
    oh_dst = (dst == iota_dst).astype(jnp.bfloat16)                # (te, tn)
    acc_ref[...] += jax.lax.dot_general(
        oh_dst, msg.astype(jnp.bfloat16),
        dimension_numbers=(((0,), (0,)), ((), ())),
        preferred_element_type=jnp.float32)                        # (tn, Dp)

    # --- finalize once per node block ----------------------------------------
    @pl.when(e == num_e - 1)
    def _finalize():
        # sum-then-project == project-then-sum (linearity of W_neighbor)
        node_repr = jnp.dot(acc_ref[...], wn_ref[...],
                            preferred_element_type=jnp.float32)
        node_repr = node_repr * norm_ref[...]
        if self_loop:
            node_repr = node_repr + jnp.dot(
                h_ref[...], wl_ref[...], preferred_element_type=jnp.float32)
        if skip_connect:
            prev = prev_ref[...]
            gate = jax.nn.sigmoid(
                jnp.dot(prev, wsk_ref[...],
                        preferred_element_type=jnp.float32) + bsk_ref[...])
            node_repr = gate * node_repr + (1.0 - gate) * prev
        # F.rrelu in eval mode == leaky relu
        node_repr = jnp.where(node_repr >= 0.0, node_repr, slope * node_repr)
        # TODO(synk): dropout is 0.0 in the reference config; not implemented.
        out_ref[...] = node_repr.astype(out_ref.dtype)


def rgcn_layer(src, typ, dst, h_gather, rel_gather, norm, wn,
               h_node=None, wl=None, prev=None, wsk=None, bsk=None,
               *, comp, self_loop, skip_connect, tile_n, tile_e):
    np_, dp = h_gather.shape
    rp = rel_gather.shape[0]
    ep = src.shape[0]
    num_n = np_ // tile_n
    num_e = ep // tile_e

    edge_spec = pl.BlockSpec((tile_e, 1), lambda n, e: (e, 0))
    node_spec = lambda cols: pl.BlockSpec((tile_n, cols), lambda n, e: (n, 0))
    resident = lambda a: pl.BlockSpec(a.shape, lambda n, e: (0, 0))

    in_specs = [edge_spec, edge_spec, edge_spec,
                resident(h_gather), resident(rel_gather),
                node_spec(1), resident(wn)]
    args = [src, typ, dst, h_gather, rel_gather, norm, wn]
    if self_loop:
        in_specs += [node_spec(dp), resident(wl)]
        args += [h_node, wl]
    if skip_connect:
        in_specs += [node_spec(dp), resident(wsk), resident(bsk)]
        args += [prev, wsk, bsk]

    kernel = functools.partial(
        _rgcn_layer_kernel, comp=comp, self_loop=self_loop,
        skip_connect=skip_connect, slope=RRELU_SLOPE)

    n_extra = 1 + int(self_loop) + int(skip_connect)
    flops = (2 * num_n * ep * (np_ + rp) * dp      # one-hot gathers (per block)
             + 2 * ep * np_ * dp                   # one-hot scatter (total)
             + 2 * np_ * dp * dp * n_extra)        # finalize matmuls
    bytes_accessed = (3 * ep * 4 + np_ * dp * 2 + rp * dp * 2 + np_ * 4
                      + n_extra * dp * dp * 4 + n_extra * np_ * dp * 4)
    cost = pl.CostEstimate(
        flops=int(flops),
        transcendentals=int(np_ * dp if skip_connect else 0),
        bytes_accessed=int(bytes_accessed))

    return pl.pallas_call(
        kernel,
        out_shape=jax.ShapeDtypeStruct((np_, dp), jnp.float32),
        grid_spec=pltpu.PrefetchScalarGridSpec(
            num_scalar_prefetch=0,
            grid=(num_n, num_e),
            in_specs=in_specs,
            out_specs=pl.BlockSpec((tile_n, dp), lambda n, e: (n, 0)),
            scratch_shapes=[pltpu.VMEM((tile_n, dp), jnp.float32)]),
        compiler_params=pltpu.CompilerParams(
            dimension_semantics=("parallel", "arbitrary"),
            vmem_limit_bytes=48 * 1024 * 1024),
        cost_estimate=cost,
    )(*args)


def xavier_uniform(key, shape, gain):
    fan_in, fan_out = shape[0], shape[-1]
    bound = gain * (6.0 / (fan_in + fan_out)) ** 0.5
    return jax.random.uniform(key, shape, jnp.float32, -bound, bound)


def init_rgcn_params(key, h_dim, n_layers):
    gain = 2.0 ** 0.5  # nn.init.calculate_gain('relu')
    params = []
    for _ in range(n_layers):
        key, k1, k2, k3 = jax.random.split(key, 4)
        params.append(dict(
            w_neighbor=xavier_uniform(k1, (h_dim, h_dim), gain),
            w_loop=xavier_uniform(k2, (h_dim, h_dim), gain),
            w_skip=xavier_uniform(k3, (h_dim, h_dim), gain),
            b_skip=jnp.zeros((h_dim,), jnp.float32),   # nn.init.zeros_
        ))
    return params


def rgcn_forward(node_id, init_ent_emb, init_rel_emb, src, dst, typ, norm,
                 params, *, self_loop, skip_connect, comp,
                 tile_n=256, tile_e=256):
    # Glue: initial node features g.ndata['h'] = init_ent_emb[node_id]
    h = init_ent_emb[node_id].astype(jnp.float32)
    N, D = h.shape
    R = init_rel_emb.shape[0]
    E = src.shape[0]

    dp = _round_up(max(D, 128), 128)                 # lane-dense feature dim
    tn = min(tile_n, _round_up(N, 128))
    np_ = _round_up(N, tn)
    te = min(tile_e, _round_up(E, 128))
    ep = _round_up(E, te)
    rp = _round_up(max(R, 128), 128)

    def pad2(x, rows, cols):
        return jnp.pad(x, ((0, rows - x.shape[0]), (0, cols - x.shape[1])))

    h_p = pad2(h, np_, dp)
    rel_bf16 = pad2(init_rel_emb.astype(jnp.float32), rp, dp).astype(jnp.bfloat16)
    norm_p = jnp.pad(norm.astype(jnp.float32).reshape(-1, 1),
                     ((0, np_ - N), (0, 0)))

    src_p = jnp.pad(src.astype(jnp.int32), (0, ep - E)).reshape(ep, 1)
    typ_p = jnp.pad(typ.astype(jnp.int32), (0, ep - E)).reshape(ep, 1)
    dst_p = jnp.pad(dst.astype(jnp.int32), (0, ep - E),
                    constant_values=-1).reshape(ep, 1)   # padded edges hit no node

    def pad_w(w):
        return pad2(w.astype(jnp.float32), dp, dp)

    prev_h = None
    for i, p in enumerate(params):
        sc = skip_connect and (i > 0)
        h_p = rgcn_layer(
            src_p, typ_p, dst_p, h_p.astype(jnp.bfloat16), rel_bf16, norm_p,
            pad_w(p['w_neighbor']),
            h_node=h_p if self_loop else None,
            wl=pad_w(p['w_loop']) if self_loop else None,
            prev=prev_h if sc else None,
            wsk=pad_w(p['w_skip']) if sc else None,
            bsk=jnp.pad(p['b_skip'].astype(jnp.float32).reshape(1, -1),
                        ((0, 0), (0, dp - D))) if sc else None,
            comp=comp, self_loop=self_loop, skip_connect=sc,
            tile_n=tn, tile_e=te)
        prev_h = h_p
    return h_p[:N, :D]


def rgcn_reference(node_id, init_ent_emb, init_rel_emb, src, dst, typ, norm,
                   params, *, self_loop, skip_connect, comp):
    """Pure-JAX f32 reference mirroring the PyTorch module."""
    h = init_ent_emb[node_id].astype(jnp.float32)
    prev = None
    for i, p in enumerate(params):
        sc = skip_connect and (i > 0)
        node = h[src]
        relation = init_rel_emb[typ]
        msg = node + relation if comp == 'sub' else node * relation
        msg = msg @ p['w_neighbor']
        agg = jnp.zeros_like(h).at[dst].add(msg)
        nr = agg * norm[:, None]
        if self_loop:
            nr = nr + h @ p['w_loop']
        if sc:
            gate = jax.nn.sigmoid(prev @ p['w_skip'] + p['b_skip'][None, :])
            nr = gate * nr + (1.0 - gate) * prev
        nr = jnp.where(nr >= 0.0, nr, RRELU_SLOPE * nr)
        h = nr
        prev = nr
    return h


if __name__ == "__main__":
    # Small synthetic graph, consistent with RGCN(num_nodes, h_dim, ...)
    N, D, R, E = 200, 32, 8, 512     # nodes, hidden dim, relations, edges
    n_layers = 2
    self_loop = True
    skip_connect = True
    comp = 'sub'

    key = jax.random.PRNGKey(0)
    k_ent, k_rel, k_src, k_dst, k_typ, k_par = jax.random.split(key, 6)

    init_ent_emb = jax.random.normal(k_ent, (N, D), jnp.float32)
    init_rel_emb = jax.random.normal(k_rel, (R, D), jnp.float32)
    node_id = jnp.arange(N, dtype=jnp.int32)

    src = jax.random.randint(k_src, (E,), 0, N, jnp.int32)
    dst = jax.random.randint(k_dst, (E,), 0, N, jnp.int32)
    typ = jax.random.randint(k_typ, (E,), 0, R, jnp.int32)

    # per-node norm = 1 / in-degree (DGL convention), clamped to avoid div-0
    indeg = jnp.zeros((N,), jnp.float32).at[dst].add(1.0)
    norm = 1.0 / jnp.maximum(indeg, 1.0)

    params = init_rgcn_params(k_par, D, n_layers)

    out = rgcn_forward(node_id, init_ent_emb, init_rel_emb, src, dst, typ,
                       norm, params, self_loop=self_loop,
                       skip_connect=skip_connect, comp=comp,
                       tile_n=128, tile_e=128)   # grid (2 node blocks, 4 edge blocks)
    out = jax.block_until_ready(out)

    ref = rgcn_reference(node_id, init_ent_emb, init_rel_emb, src, dst, typ,
                         norm, params, self_loop=self_loop,
                         skip_connect=skip_connect, comp=comp)
    err = float(jnp.max(jnp.abs(out - ref)))

    assert out.shape == (N, D) and out.dtype == jnp.float32
    assert bool(jnp.all(jnp.isfinite(out)))
    # bf16 one-hot gathers/scatter with f32 accumulation -> loose tolerance.
    assert err < 0.2, f"max abs diff vs f32 reference: {err}"
    print("KERNEL_OK")
</pallas_src>

<mosaic_0001>
module attributes {stable_mosaic.version = 11 : i64} {
  func.func @_rgcn_layer_kernel(%arg0: i32, %arg1: i32, %arg2: memref<128x1xi32, #tpu.memory_space<vmem>>, %arg3: memref<128x1xi32, #tpu.memory_space<vmem>>, %arg4: memref<128x1xi32, #tpu.memory_space<vmem>>, %arg5: memref<256x128xbf16, #tpu.memory_space<vmem>>, %arg6: memref<128x128xbf16, #tpu.memory_space<vmem>>, %arg7: memref<128x1xf32, #tpu.memory_space<vmem>>, %arg8: memref<128x128xf32, #tpu.memory_space<vmem>>, %arg9: memref<128x128xf32, #tpu.memory_space<vmem>>, %arg10: memref<128x128xf32, #tpu.memory_space<vmem>>, %arg11: memref<128x128xf32, #tpu.memory_space<vmem>>, %arg12: memref<128x128xf32, #tpu.memory_space<vmem>>) attributes {dimension_semantics = [#tpu.dimension_semantics<parallel>, #tpu.dimension_semantics<arbitrary>], iteration_bounds = array<i64: 2, 4>, scalar_prefetch = 0 : i64, scratch_operands = 1 : i64, tpu.core_type = #tpu.core_type<tc>, window_params = [{transform_indices = @transform_0, window_bounds = array<i64: 128, 1>}, {transform_indices = @transform_1, window_bounds = array<i64: 128, 1>}, {transform_indices = @transform_2, window_bounds = array<i64: 128, 1>}, {pipeline_mode = #tpu.pipeline_mode<synchronous>, transform_indices = @transform_3, window_bounds = array<i64: 256, 128>}, {pipeline_mode = #tpu.pipeline_mode<synchronous>, transform_indices = @transform_4, window_bounds = array<i64: 128, 128>}, {transform_indices = @transform_5, window_bounds = array<i64: 128, 1>}, {pipeline_mode = #tpu.pipeline_mode<synchronous>, transform_indices = @transform_6, window_bounds = array<i64: 128, 128>}, {transform_indices = @transform_7, window_bounds = array<i64: 128, 128>}, {pipeline_mode = #tpu.pipeline_mode<synchronous>, transform_indices = @transform_8, window_bounds = array<i64: 128, 128>}, {transform_indices = @transform_9, window_bounds = array<i64: 128, 128>}]} {
    %c0_i32 = arith.constant 0 : i32
    %0 = arith.cmpi eq, %arg1, %c0_i32 : i32
    %1 = arith.extui %0 : i1 to i32
    %c0_i32_0 = arith.constant 0 : i32
    %2 = arith.cmpi ne, %1, %c0_i32_0 : i32
    scf.if %2 {
      %cst_17 = arith.constant 0.000000e+00 : f32
      %40 = vector.broadcast %cst_17 : f32 to vector<128x128xf32>
      %c0_18 = arith.constant 0 : index
      %c0_19 = arith.constant 0 : index
      %41 = vector.load %arg12[%c0_18, %c0_19] : memref<128x128xf32, #tpu.memory_space<vmem>>, vector<128x128xf32>
      tpu.vector_store %arg12[%c0_18, %c0_19], %40 {strides = array<i32>} : memref<128x128xf32, #tpu.memory_space<vmem>>, vector<128x128xf32>,
    } else {
    }
    %c0 = arith.constant 0 : index
    %c0_1 = arith.constant 0 : index
    %3 = vector.load %arg2[%c0, %c0_1] : memref<128x1xi32, #tpu.memory_space<vmem>>, vector<128x1xi32>
    %c0_2 = arith.constant 0 : index
    %c0_3 = arith.constant 0 : index
    %4 = vector.load %arg3[%c0_2, %c0_3] : memref<128x1xi32, #tpu.memory_space<vmem>>, vector<128x1xi32>
    %c0_4 = arith.constant 0 : index
    %c0_5 = arith.constant 0 : index
    %5 = vector.load %arg4[%c0_4, %c0_5] : memref<128x1xi32, #tpu.memory_space<vmem>>, vector<128x1xi32>
    %6 = tpu.iota {dimensions = array<i32: 1>} : vector<128x256xi32>
    %7 = vector.broadcast %3 : vector<128x1xi32> to vector<128x256xi32>
    %8 = arith.cmpi eq, %7, %6 : vector<128x256xi32>
    %9 = arith.extui %8 : vector<128x256xi1> to vector<128x256xi32>
    %10 = arith.sitofp %9 : vector<128x256xi32> to vector<128x256xf32>
    %11 = arith.truncf %10 : vector<128x256xf32> to vector<128x256xbf16>
    %12 = tpu.iota {dimensions = array<i32: 1>} : vector<128x128xi32>
    %13 = vector.broadcast %4 : vector<128x1xi32> to vector<128x128xi32>
    %14 = arith.cmpi eq, %13, %12 : vector<128x128xi32>
    %15 = arith.extui %14 : vector<128x128xi1> to vector<128x128xi32>
    %16 = arith.sitofp %15 : vector<128x128xi32> to vector<128x128xf32>
    %17 = arith.truncf %16 : vector<128x128xf32> to vector<128x128xbf16>
    %c0_6 = arith.constant 0 : index
    %c0_7 = arith.constant 0 : index
    %18 = vector.load %arg5[%c0_6, %c0_7] : memref<256x128xbf16, #tpu.memory_space<vmem>>, vector<256x128xbf16>
    %cst = arith.constant dense<0.000000e+00> : vector<128x128xf32>
    %19 = tpu.matmul %11, %18, %cst {dimension_numbers = #tpu.dot_dimension_numbers<[1], [0], [0], [1], [0, 0, 1, 1], [], []>} : vector<128x256xbf16>, vector<256x128xbf16>, vector<128x128xf32> -> vector<128x128xf32>
    %c0_8 = arith.constant 0 : index
    %c0_9 = arith.constant 0 : index
    %20 = vector.load %arg6[%c0_8, %c0_9] : memref<128x128xbf16, #tpu.memory_space<vmem>>, vector<128x128xbf16>
    %cst_10 = arith.constant dense<0.000000e+00> : vector<128x128xf32>
    %21 = tpu.matmul %17, %20, %cst_10 {dimension_numbers = #tpu.dot_dimension_numbers<[1], [0], [0], [1], [0, 0, 1, 1], [], []>} : vector<128x128xbf16>, vector<128x128xbf16>, vector<128x128xf32> -> vector<128x128xf32>
    %22 = arith.addf %19, %21 : vector<128x128xf32>
    %23 = tpu.iota {dimensions = array<i32: 1>} : vector<128x128xi32>
    %c128_i32 = arith.constant 128 : i32
    %24 = arith.muli %arg0, %c128_i32 : i32
    %25 = vector.broadcast %24 : i32 to vector<128x128xi32>
    %26 = arith.addi %23, %25 : vector<128x128xi32>
    %27 = vector.broadcast %5 : vector<128x1xi32> to vector<128x128xi32>
    %28 = arith.cmpi eq, %27, %26 : vector<128x128xi32>
    %29 = arith.extui %28 : vector<128x128xi1> to vector<128x128xi32>
    %30 = arith.sitofp %29 : vector<128x128xi32> to vector<128x128xf32>
    %31 = arith.truncf %30 : vector<128x128xf32> to vector<128x128xbf16>
    %c0_11 = arith.constant 0 : index
    %c0_12 = arith.constant 0 : index
    %32 = vector.load %arg12[%c0_11, %c0_12] : memref<128x128xf32, #tpu.memory_space<vmem>>, vector<128x128xf32>
    %33 = arith.truncf %22 : vector<128x128xf32> to vector<128x128xbf16>
    %cst_13 = arith.constant dense<0.000000e+00> : vector<128x128xf32>
    %34 = tpu.matmul %31, %33, %cst_13 {dimension_numbers = #tpu.dot_dimension_numbers<[0], [0], [1], [1], [0, 1, 1, 1], [], []>} : vector<128x128xbf16>, vector<128x128xbf16>, vector<128x128xf32> -> vector<128x128xf32>
    %35 = arith.addf %32, %34 : vector<128x128xf32>
    %c0_14 = arith.constant 0 : index
    %c0_15 = arith.constant 0 : index
    %36 = vector.load %arg12[%c0_14, %c0_15] : memref<128x128xf32, #tpu.memory_space<vmem>>, vector<128x128xf32>
    tpu.vector_store %arg12[%c0_14, %c0_15], %35 {strides = array<i32>} : memref<128x128xf32, #tpu.memory_space<vmem>>, vector<128x128xf32>,
    %c3_i32 = arith.constant 3 : i32
    %37 = arith.cmpi eq, %arg1, %c3_i32 : i32
    %38 = arith.extui %37 : i1 to i32
    %c0_i32_16 = arith.constant 0 : i32
    %39 = arith.cmpi ne, %38, %c0_i32_16 : i32
    scf.if %39 {
      %c0_17 = arith.constant 0 : index
      %c0_18 = arith.constant 0 : index
      %40 = vector.load %arg12[%c0_17, %c0_18] : memref<128x128xf32, #tpu.memory_space<vmem>>, vector<128x128xf32>
      %c0_19 = arith.constant 0 : index
      %c0_20 = arith.constant 0 : index
      %41 = vector.load %arg8[%c0_19, %c0_20] : memref<128x128xf32, #tpu.memory_space<vmem>>, vector<128x128xf32>
      %cst_21 = arith.constant dense<0.000000e+00> : vector<128x128xf32>
      %42 = tpu.matmul %40, %41, %cst_21 {dimension_numbers = #tpu.dot_dimension_numbers<[1], [0], [0], [1], [0, 0, 1, 1], [], []>} : vector<128x128xf32>, vector<128x128xf32>, vector<128x128xf32> -> vector<128x128xf32>
      %c0_22 = arith.constant 0 : index
      %c0_23 = arith.constant 0 : index
      %43 = vector.load %arg7[%c0_22, %c0_23] : memref<128x1xf32, #tpu.memory_space<vmem>>, vector<128x1xf32>
      %44 = vector.broadcast %43 : vector<128x1xf32> to vector<128x128xf32>
      %45 = arith.mulf %42, %44 : vector<128x128xf32>
      %c0_24 = arith.constant 0 : index
      %c0_25 = arith.constant 0 : index
      %46 = vector.load %arg9[%c0_24, %c0_25] : memref<128x128xf32, #tpu.memory_space<vmem>>, vector<128x128xf32>
      %c0_26 = arith.constant 0 : index
      %c0_27 = arith.constant 0 : index
      %47 = vector.load %arg10[%c0_26, %c0_27] : memref<128x128xf32, #tpu.memory_space<vmem>>, vector<128x128xf32>
      %cst_28 = arith.constant dense<0.000000e+00> : vector<128x128xf32>
      %48 = tpu.matmul %46, %47, %cst_28 {dimension_numbers = #tpu.dot_dimension_numbers<[1], [0], [0], [1], [0, 0, 1, 1], [], []>} : vector<128x128xf32>, vector<128x128xf32>, vector<128x128xf32> -> vector<128x128xf32>
      %49 = arith.addf %45, %48 : vector<128x128xf32>
      %cst_29 = arith.constant 0.000000e+00 : f32
      %50 = vector.broadcast %cst_29 : f32 to vector<128x128xf32>
      %51 = arith.cmpf oge, %49, %50 : vector<128x128xf32>
      %cst_30 = arith.constant 0.229166672 : f32
      %52 = vector.broadcast %cst_30 : f32 to vector<128x128xf32>
      %53 = arith.mulf %52, %49 : vector<128x128xf32>
      %54 = arith.select %51, %49, %53 : vector<128x128xi1>, vector<128x128xf32>
      %c0_31 = arith.constant 0 : index
      %c0_32 = arith.constant 0 : index
      %55 = vector.load %arg11[%c0_31, %c0_32] : memref<128x128xf32, #tpu.memory_space<vmem>>, vector<128x128xf32>
      tpu.vector_store %arg11[%c0_31, %c0_32], %54 {strides = array<i32>} : memref<128x128xf32, #tpu.memory_space<vmem>>, vector<128x128xf32>,
    } else {
    }
    return
  }
  func.func @transform_0(%arg0: i32, %arg1: i32) -> (i32, i32) {
    %c0_i32 = arith.constant 0 : i32
    %c0_i32_0 = arith.constant 0 : i32
    return %arg1, %c0_i32 : i32, i32
  }
  func.func @transform_1(%arg0: i32, %arg1: i32) -> (i32, i32) {
    %c0_i32 = arith.constant 0 : i32
    %c0_i32_0 = arith.constant 0 : i32
    return %arg1, %c0_i32 : i32, i32
  }
  func.func @transform_2(%arg0: i32, %arg1: i32) -> (i32, i32) {
    %c0_i32 = arith.constant 0 : i32
    %c0_i32_0 = arith.constant 0 : i32
    return %arg1, %c0_i32 : i32, i32
  }
  func.func @transform_3(%arg0: i32, %arg1: i32) -> (i32, i32) {
    %c0_i32 = arith.constant 0 : i32
    %c0_i32_0 = arith.constant 0 : i32
    %c0_i32_1 = arith.constant 0 : i32
    return %c0_i32, %c0_i32_0 : i32, i32
  }
  func.func @transform_4(%arg0: i32, %arg1: i32) -> (i32, i32) {
    %c0_i32 = arith.constant 0 : i32
    %c0_i32_0 = arith.constant 0 : i32
    %c0_i32_1 = arith.constant 0 : i32
    return %c0_i32, %c0_i32_0 : i32, i32
  }
  func.func @transform_5(%arg0: i32, %arg1: i32) -> (i32, i32) {
    %c0_i32 = arith.constant 0 : i32
    %c0_i32_0 = arith.constant 0 : i32
    return %arg0, %c0_i32 : i32, i32
  }
  func.func @transform_6(%arg0: i32, %arg1: i32) -> (i32, i32) {
    %c0_i32 = arith.constant 0 : i32
    %c0_i32_0 = arith.constant 0 : i32
    %c0_i32_1 = arith.constant 0 : i32
    return %c0_i32, %c0_i32_0 : i32, i32
  }
  func.func @transform_7(%arg0: i32, %arg1: i32) -> (i32, i32) {
    %c0_i32 = arith.constant 0 : i32
    %c0_i32_0 = arith.constant 0 : i32
    return %arg0, %c0_i32 : i32, i32
  }
  func.func @transform_8(%arg0: i32, %arg1: i32) -> (i32, i32) {
    %c0_i32 = arith.constant 0 : i32
    %c0_i32_0 = arith.constant 0 : i32
    %c0_i32_1 = arith.constant 0 : i32
    return %c0_i32, %c0_i32_0 : i32, i32
  }
  func.func @transform_9(%arg0: i32, %arg1: i32) -> (i32, i32) {
    %c0_i32 = arith.constant 0 : i32
    %c0_i32_0 = arith.constant 0 : i32
    return %arg0, %c0_i32 : i32, i32
  }
}

</mosaic_0001>

<llo_original>
// kernel: tpu_custom_call.1
$region0: #{tpu_custom_call.1}
  #allocation0 [shape = 'u32[]', space=smem, size = 0x4, offset = 0x4, fixed_abs, tag = 'smem constant byte address 0x4 - core index']
  #allocation1 [shape = 'u32[144,128]{1,0:T(1,128)}', space=vmem, size = 0x12000, scoped, tag = 'internal scratch']
  #allocation2 [shape = 'f32[128,128]{1,0:T(8,128)}', space=vmem, size = 0x10000, scoped, tag = 'scratch operand']
  %s0 = inlined_call_operand.vmem [shape: s32[512,1], index: 0, kind: input, shape index: {}]
  %s1 = inlined_call_operand.vmem [shape: s32[512,1], index: 1, kind: input, shape index: {}]
  %s2 = inlined_call_operand.vmem [shape: s32[512,1], index: 2, kind: input, shape index: {}]
  %s3 = inlined_call_operand.vmem [shape: bf16[256,128], index: 3, kind: input, shape index: {}]
  %s4 = inlined_call_operand.vmem [shape: bf16[128,128], index: 4, kind: input, shape index: {}]
  %s5 = inlined_call_operand.vmem [shape: f32[256,1], index: 5, kind: input, shape index: {}]
  %s6 = inlined_call_operand.vmem [shape: f32[128,128], index: 6, kind: input, shape index: {}]
  %s7 = inlined_call_operand.vmem [shape: f32[256,128], index: 7, kind: input, shape index: {}]
  %s8 = inlined_call_operand.vmem [shape: f32[128,128], index: 8, kind: input, shape index: {}]
  %s9 = inlined_call_operand.hbm [shape: f32[256,128], index: 9, kind: output, shape index: {}]
  %s10 = sld [smem:[#allocation0]]
  $region77: #{tpu_custom_call.1} parent=0
    _
  %s12 = ssub.s32 1, %s10
  %s13 = scalar_select 0, %s12, %s10
  $region1: #{tpu_custom_call.1} parent=0
    #allocation3 [shape = 'u8[131072]{0}', space=vmem, size = 0x20000, scoped, tag = 'output window, operand 0']
    #allocation4 [shape = 's32[2]{0}', space=sflag, size = 0x8, scoped, tag = 'scoped memory for tpu_custom_call.1']
    %14 = vsyncpa [#allocation4], 0
    %s15 = scalar_lea.sflag [#allocation4], 1
    %16 = vsyncpa %s15, 0
    loop: start=0, step=1, limit=10
    $region2: #{tpu_custom_call.1} parent=1 // loop_pre_header
      _
    $region3: #{tpu_custom_call.1} parent=1 // loop_header
      %s18 = sphi 0, %s22
      %p19 = scmp.ge.s32.totalorder %s18, 10
      %s25 = sphi 0, %s37
      %s26 = sphi 0, %s33
      %s27 = sphi 0, %s25
      %s28 = sphi 0, %s26
      %s29 = sphi 0, %s27
      %s30 = sphi 0, %s28
      %s40 = sphi 0, %s42
      %s43 = sphi 0, %s40
      %s44 = sphi 0, %s43
      %s60 = sphi 0, %s44
      %s66 = sphi 0, %s68
      %s69 = sphi 0, %s66
      %s70 = sphi 0, %s69
      %s86 = sphi 0, %s70
      %s92 = sphi 0, %s94
      %s95 = sphi 0, %s92
      %s96 = sphi 0, %s95
      %s112 = sphi 0, %s96
      %s116 = sphi 0, %s116
      %s118 = sphi 0, %s116
      %s119 = sphi 0, %s118
      %s133 = sphi 0, %s119
      %s137 = sphi 0, %s137
      %s139 = sphi 0, %s137
      %s140 = sphi 0, %s139
      %s154 = sphi 0, %s140
      %s160 = sphi 0, %s162
      %s163 = sphi 0, %s160
      %s164 = sphi 0, %s163
      %s180 = sphi 0, %s164
      %s184 = sphi 0, %s184
      %s186 = sphi 0, %s184
      %s187 = sphi 0, %s186
      %s201 = sphi 0, %s187
      %s207 = sphi 0, %s209
      %s210 = sphi 0, %s207
      %s211 = sphi 0, %s210
      %s227 = sphi 0, %s211
      %s231 = sphi 0, %s231
      %s233 = sphi 0, %s231
      %s234 = sphi 0, %s233
      %s248 = sphi 0, %s234
      %s254 = sphi 0, %s256
      %s257 = sphi 0, %s254
      %s258 = sphi 0, %s257
      %s274 = sphi 0, %s258
    $region4: #{tpu_custom_call.1} parent=1 // loop_header_branch
      %21 = sbr.rel (%p19) target = $region8
    $region5: #{tpu_custom_call.1} parent=1 // loop_body
      %s23 = ssub.s32 %s18, 1
      %s24 = ssub.s32 %s18, 2
      %s31 = sadd.s32 1, %s26
      %p32 = scmp.ge.s32.totalorder %s31, 4
      %s33 = scalar_select %p32, 0, %s31
      %s34 = sadd.s32 1, %s25
      %s35 = scalar_select %p32, %s34, %s25
      %p36 = scmp.ge.s32.totalorder %s35, 2
      %s37 = scalar_select %p36, 0, %s35
      %s38 = ssub.s32 %s26, %s33
      %p39 = scmp.eq.s32.totalorder %s38, 0
      %s41 = sadd.s32 %s40, 1
      %s42 = scalar_select %p39, %s40, %s41
      %p45 = pneg %p39
      %p46 = scmp.eq.s32.totalorder %s18, 7
      %p47 = por %p45, %p46
      %p48 = scmp.ne.s32.totalorder %s40, %s43
      %p49 = scmp.eq.s32.totalorder %s18, 0
      %p50 = por %p48, %p49
      %p51 = scmp.ne.s32.totalorder %s40, %s43
      %p52 = scmp.eq.s32.totalorder %s23, 7
      %p53 = por %p51, %p52
      %p54 = scmp.ne.s32.totalorder %s43, %s44
      %p55 = scmp.eq.s32.totalorder %s23, 0
      %p56 = por %p54, %p55
      %p57 = scmp.ne.s32.totalorder %s43, %s44
      %p58 = scmp.eq.s32.totalorder %s24, 7
      %p59 = por %p57, %p58
      %p61 = scmp.ne.s32.totalorder %s44, %s60
      %p62 = scmp.eq.s32.totalorder %s24, 0
      %p63 = por %p61, %p62
      %s64 = ssub.s32 %s26, %s33
      %p65 = scmp.eq.s32.totalorder %s64, 0
      %s67 = sadd.s32 %s66, 1
      %s68 = scalar_select %p65, %s66, %s67
      %p71 = pneg %p65
      %p72 = scmp.eq.s32.totalorder %s18, 7
      %p73 = por %p71, %p72
      %p74 = scmp.ne.s32.totalorder %s66, %s69
      %p75 = scmp.eq.s32.totalorder %s18, 0
      %p76 = por %p74, %p75
      %p77 = scmp.ne.s32.totalorder %s66, %s69
      %p78 = scmp.eq.s32.totalorder %s23, 7
      %p79 = por %p77, %p78
      %p80 = scmp.ne.s32.totalorder %s69, %s70
      %p81 = scmp.eq.s32.totalorder %s23, 0
      %p82 = por %p80, %p81
      %p83 = scmp.ne.s32.totalorder %s69, %s70
      %p84 = scmp.eq.s32.totalorder %s24, 7
      %p85 = por %p83, %p84
      %p87 = scmp.ne.s32.totalorder %s70, %s86
      %p88 = scmp.eq.s32.totalorder %s24, 0
      %p89 = por %p87, %p88
      %s90 = ssub.s32 %s26, %s33
      %p91 = scmp.eq.s32.totalorder %s90, 0
      %s93 = sadd.s32 %s92, 1
      %s94 = scalar_select %p91, %s92, %s93
      %p97 = pneg %p91
      %p98 = scmp.eq.s32.totalorder %s18, 7
      %p99 = por %p97, %p98
      %p100 = scmp.ne.s32.totalorder %s92, %s95
      %p101 = scmp.eq.s32.totalorder %s18, 0
      %p102 = por %p100, %p101
      %p103 = scmp.ne.s32.totalorder %s92, %s95
      %p104 = scmp.eq.s32.totalorder %s23, 7
      %p105 = por %p103, %p104
      %p106 = scmp.ne.s32.totalorder %s95, %s96
      %p107 = scmp.eq.s32.totalorder %s23, 0
      %p108 = por %p106, %p107
      %p109 = scmp.ne.s32.totalorder %s95, %s96
      %p110 = scmp.eq.s32.totalorder %s24, 7
      %p111 = por %p109, %p110
      %p113 = scmp.ne.s32.totalorder %s96, %s112
      %p114 = scmp.eq.s32.totalorder %s24, 0
      %p115 = por %p113, %p114
      %s117 = sadd.s32 %s116, 1
      %p120 = scmp.eq.s32.totalorder %s18, 7
      %p121 = scmp.ne.s32.totalorder %s116, %s118
      %p122 = scmp.eq.s32.totalorder %s18, 0
      %p123 = por %p121, %p122
      %p124 = scmp.ne.s32.totalorder %s116, %s118
      %p125 = scmp.eq.s32.totalorder %s23, 7
      %p126 = por %p124, %p125
      %p127 = scmp.ne.s32.totalorder %s118, %s119
      %p128 = scmp.eq.s32.totalorder %s23, 0
      %p129 = por %p127, %p128
      %p130 = scmp.ne.s32.totalorder %s118, %s119
      %p131 = scmp.eq.s32.totalorder %s24, 7
      %p132 = por %p130, %p131
      %p134 = scmp.ne.s32.totalorder %s119, %s133
      %p135 = scmp.eq.s32.totalorder %s24, 0
      %p136 = por %p134, %p135
      %s138 = sadd.s32 %s137, 1
      %p141 = scmp.eq.s32.totalorder %s18, 7
      %p142 = scmp.ne.s32.totalorder %s137, %s139
      %p143 = scmp.eq.s32.totalorder %s18, 0
      %p144 = por %p142, %p143
      %p145 = scmp.ne.s32.totalorder %s137, %s139
      %p146 = scmp.eq.s32.totalorder %s23, 7
      %p147 = por %p145, %p146
      %p148 = scmp.ne.s32.totalorder %s139, %s140
      %p149 = scmp.eq.s32.totalorder %s23, 0
      %p150 = por %p148, %p149
      %p151 = scmp.ne.s32.totalorder %s139, %s140
      %p152 = scmp.eq.s32.totalorder %s24, 7
      %p153 = por %p151, %p152
      %p155 = scmp.ne.s32.totalorder %s140, %s154
      %p156 = scmp.eq.s32.totalorder %s24, 0
      %p157 = por %p155, %p156
      %s158 = ssub.s32 %s25, %s37
      %p159 = scmp.eq.s32.totalorder %s158, 0
      %s161 = sadd.s32 %s160, 1
      %s162 = scalar_select %p159, %s160, %s161
      %p165 = pneg %p159
      %p166 = scmp.eq.s32.totalorder %s18, 7
      %p167 = por %p165, %p166
      %p168 = scmp.ne.s32.totalorder %s160, %s163
      %p169 = scmp.eq.s32.totalorder %s18, 0
      %p170 = por %p168, %p169
      %p171 = scmp.ne.s32.totalorder %s160, %s163
      %p172 = scmp.eq.s32.totalorder %s23, 7
      %p173 = por %p171, %p172
      %p174 = scmp.ne.s32.totalorder %s163, %s164
      %p175 = scmp.eq.s32.totalorder %s23, 0
      %p176 = por %p174, %p175
      %p177 = scmp.ne.s32.totalorder %s163, %s164
      %p178 = scmp.eq.s32.totalorder %s24, 7
      %p179 = por %p177, %p178
      %p181 = scmp.ne.s32.totalorder %s164, %s180
      %p182 = scmp.eq.s32.totalorder %s24, 0
      %p183 = por %p181, %p182
      %s185 = sadd.s32 %s184, 1
      %p188 = scmp.eq.s32.totalorder %s18, 7
      %p189 = scmp.ne.s32.totalorder %s184, %s186
      %p190 = scmp.eq.s32.totalorder %s18, 0
      %p191 = por %p189, %p190
      %p192 = scmp.ne.s32.totalorder %s184, %s186
      %p193 = scmp.eq.s32.totalorder %s23, 7
      %p194 = por %p192, %p193
      %p195 = scmp.ne.s32.totalorder %s186, %s187
      %p196 = scmp.eq.s32.totalorder %s23, 0
      %p197 = por %p195, %p196
      %p198 = scmp.ne.s32.totalorder %s186, %s187
      %p199 = scmp.eq.s32.totalorder %s24, 7
      %p200 = por %p198, %p199
      %p202 = scmp.ne.s32.totalorder %s187, %s201
      %p203 = scmp.eq.s32.totalorder %s24, 0
      %p204 = por %p202, %p203
      %s205 = ssub.s32 %s25, %s37
      %p206 = scmp.eq.s32.totalorder %s205, 0
      %s208 = sadd.s32 %s207, 1
      %s209 = scalar_select %p206, %s207, %s208
      %p212 = pneg %p206
      %p213 = scmp.eq.s32.totalorder %s18, 7
      %p214 = por %p212, %p213
      %p215 = scmp.ne.s32.totalorder %s207, %s210
      %p216 = scmp.eq.s32.totalorder %s18, 0
      %p217 = por %p215, %p216
      %p218 = scmp.ne.s32.totalorder %s207, %s210
      %p219 = scmp.eq.s32.totalorder %s23, 7
      %p220 = por %p218, %p219
      %p221 = scmp.ne.s32.totalorder %s210, %s211
      %p222 = scmp.eq.s32.totalorder %s23, 0
      %p223 = por %p221, %p222
      %p224 = scmp.ne.s32.totalorder %s210, %s211
      %p225 = scmp.eq.s32.totalorder %s24, 7
      %p226 = por %p224, %p225
      %p228 = scmp.ne.s32.totalorder %s211, %s227
      %p229 = scmp.eq.s32.totalorder %s24, 0
      %p230 = por %p228, %p229
      %s232 = sadd.s32 %s231, 1
      %p235 = scmp.eq.s32.totalorder %s18, 7
      %p236 = scmp.ne.s32.totalorder %s231, %s233
      %p237 = scmp.eq.s32.totalorder %s18, 0
      %p238 = por %p236, %p237
      %p239 = scmp.ne.s32.totalorder %s231, %s233
      %p240 = scmp.eq.s32.totalorder %s23, 7
      %p241 = por %p239, %p240
      %p242 = scmp.ne.s32.totalorder %s233, %s234
      %p243 = scmp.eq.s32.totalorder %s23, 0
      %p244 = por %p242, %p243
      %p245 = scmp.ne.s32.totalorder %s233, %s234
      %p246 = scmp.eq.s32.totalorder %s24, 7
      %p247 = por %p245, %p246
      %p249 = scmp.ne.s32.totalorder %s234, %s248
      %p250 = scmp.eq.s32.totalorder %s24, 0
      %p251 = por %p249, %p250
      %s252 = ssub.s32 %s25, %s37
      %p253 = scmp.eq.s32.totalorder %s252, 0
      %s255 = sadd.s32 %s254, 1
      %s256 = scalar_select %p253, %s254, %s255
      %p259 = pneg %p253
      %p260 = scmp.eq.s32.totalorder %s18, 7
      %p261 = por %p259, %p260
      %p262 = scmp.ne.s32.totalorder %s254, %s257
      %p263 = scmp.eq.s32.totalorder %s18, 0
      %p264 = por %p262, %p263
      %p265 = scmp.ne.s32.totalorder %s254, %s257
      %p266 = scmp.eq.s32.totalorder %s23, 7
      %p267 = por %p265, %p266
      %p268 = scmp.ne.s32.totalorder %s257, %s258
      %p269 = scmp.eq.s32.totalorder %s23, 0
      %p270 = por %p268, %p269
      %p271 = scmp.ne.s32.totalorder %s257, %s258
      %p272 = scmp.eq.s32.totalorder %s24, 7
      %p273 = por %p271, %p272
      %p275 = scmp.ne.s32.totalorder %s258, %s274
      %p276 = scmp.eq.s32.totalorder %s24, 0
      %p277 = por %p275, %p276
      %p278 = scmp.le.s32.totalorder 1, %s18
      %p279 = scmp.lt.s32.totalorder %s18, 9
      %p280 = pnand %p278, %p279
      %p281 = pneg %p280
      // Predicated region
      $region9: #{tpu_custom_call.1} parent=5 // pred_check
        _
      $region10: #{tpu_custom_call.1} parent=5 // pred_check_branch
        %283 = sbr.rel (%p280) target = $region12
      $region11: #{tpu_custom_call.1} parent=5 // pred_region
        %s284 = ssub.s32 %s18, 1
        // Predicated region
        $region13: #{tpu_custom_call.1} parent=11 // pred_check
          %p285 = pneg %p129
        $region14: #{tpu_custom_call.1} parent=11 // pred_check_branch
          %287 = sbr.rel (%p285) target = $region16
        $region15: #{tpu_custom_call.1} parent=11 // pred_region
          _
        $region16: #{tpu_custom_call.1} parent=11 // pred_fallthru
          _
        // Predicated region
        $region17: #{tpu_custom_call.1} parent=11 // pred_check
          %p288 = pneg %p150
        $region18: #{tpu_custom_call.1} parent=11 // pred_check_branch
          %290 = sbr.rel (%p288) target = $region20
        $region19: #{tpu_custom_call.1} parent=11 // pred_region
          _
        $region20: #{tpu_custom_call.1} parent=11 // pred_fallthru
          _
        // Predicated region
        $region21: #{tpu_custom_call.1} parent=11 // pred_check
          %p291 = pneg %p197
        $region22: #{tpu_custom_call.1} parent=11 // pred_check_branch
          %293 = sbr.rel (%p291) target = $region24
        $region23: #{tpu_custom_call.1} parent=11 // pred_region
          _
        $region24: #{tpu_custom_call.1} parent=11 // pred_fallthru
          _
        // Predicated region
        $region25: #{tpu_custom_call.1} parent=11 // pred_check
          %p294 = pneg %p244
        $region26: #{tpu_custom_call.1} parent=11 // pred_check_branch
          %296 = sbr.rel (%p294) target = $region28
        $region27: #{tpu_custom_call.1} parent=11 // pred_region
          _
        $region28: #{tpu_custom_call.1} parent=11 // pred_fallthru
          _
      $region12: #{tpu_custom_call.1} parent=5 // pred_fallthru
        _
      %p297 = scmp.lt.s32.totalorder %s18, 8
      // Predicated region
      $region29: #{tpu_custom_call.1} parent=5 // pred_check
        %p298 = pneg %p297
      $region30: #{tpu_custom_call.1} parent=5 // pred_check_branch
        %300 = sbr.rel (%p298) target = $region32
      $region31: #{tpu_custom_call.1} parent=5 // pred_region
        // Predicated region
        $region33: #{tpu_custom_call.1} parent=31 // pred_check
          %p301 = pneg %p50
        $region34: #{tpu_custom_call.1} parent=31 // pred_check_branch
          %303 = sbr.rel (%p301) target = $region36
        $region35: #{tpu_custom_call.1} parent=31 // pred_region
          %s304 = smul.u32 16, %s26
          %p305 = scmp.lt.s32.totalorder %s304, 63
          %s306 = scalar_select %p305, %s304, 63
          %s307 = smul.addr %s306, 8
          %s308 = scalar_lea.vmem %s0, %s307
          %s309 = smul.u32 16, %s26
        $region36: #{tpu_custom_call.1} parent=31 // pred_fallthru
          _
        // Predicated region
        $region37: #{tpu_custom_call.1} parent=31 // pred_check
          %p310 = pneg %p76
        $region38: #{tpu_custom_call.1} parent=31 // pred_check_branch
          %312 = sbr.rel (%p310) target = $region40
        $region39: #{tpu_custom_call.1} parent=31 // pred_region
          %s313 = smul.u32 16, %s26
          %p314 = scmp.lt.s32.totalorder %s313, 63
          %s315 = scalar_select %p314, %s313, 63
          %s316 = smul.addr %s315, 8
          %s317 = scalar_lea.vmem %s1, %s316
          %s318 = smul.u32 16, %s26
        $region40: #{tpu_custom_call.1} parent=31 // pred_fallthru
          _
        // Predicated region
        $region41: #{tpu_custom_call.1} parent=31 // pred_check
          %p319 = pneg %p102
        $region42: #{tpu_custom_call.1} parent=31 // pred_check_branch
          %321 = sbr.rel (%p319) target = $region44
        $region43: #{tpu_custom_call.1} parent=31 // pred_region
          %s322 = smul.u32 16, %s26
          %p323 = scmp.lt.s32.totalorder %s322, 63
          %s324 = scalar_select %p323, %s322, 63
          %s325 = smul.addr %s324, 8
          %s326 = scalar_lea.vmem %s2, %s325
          %s327 = smul.u32 16, %s26
        $region44: #{tpu_custom_call.1} parent=31 // pred_fallthru
          _
        // Predicated region
        $region45: #{tpu_custom_call.1} parent=31 // pred_check
          %p328 = pneg %p170
        $region46: #{tpu_custom_call.1} parent=31 // pred_check_branch
          %330 = sbr.rel (%p328) target = $region48
        $region47: #{tpu_custom_call.1} parent=31 // pred_region
          %s331 = smul.u32 16, %s25
          %p332 = scmp.lt.s32.totalorder %s331, 31
          %s333 = scalar_select %p332, %s331, 31
          %s334 = smul.addr %s333, 8
          %s335 = scalar_lea.vmem %s5, %s334
          %s336 = smul.u32 16, %s25
        $region48: #{tpu_custom_call.1} parent=31 // pred_fallthru
          _
        // Predicated region
        $region49: #{tpu_custom_call.1} parent=31 // pred_check
          %p337 = pneg %p217
        $region50: #{tpu_custom_call.1} parent=31 // pred_check_branch
          %339 = sbr.rel (%p337) target = $region52
        $region51: #{tpu_custom_call.1} parent=31 // pred_region
          %s340 = smul.u32 16, %s25
          %p341 = scmp.lt.s32.totalorder %s340, 31
          %s342 = scalar_select %p341, %s340, 31
          %s343 = smul.addr %s342, 8
          %s344 = scalar_lea.vmem %s7, %s343
          %s345 = smul.u32 16, %s25
        $region52: #{tpu_custom_call.1} parent=31 // pred_fallthru
          _
      $region32: #{tpu_custom_call.1} parent=5 // pred_fallthru
        _
      %p346 = scmp.le.s32.totalorder 1, %s18
      %p347 = scmp.lt.s32.totalorder %s18, 9
      %p348 = pnand %p346, %p347
      %p349 = pneg %p348
      // Predicated region
      $region53: #{tpu_custom_call.1} parent=5 // pred_check
        _
      $region54: #{tpu_custom_call.1} parent=5 // pred_check_branch
        %351 = sbr.rel (%p348) target = $region56
      $region55: #{tpu_custom_call.1} parent=5 // pred_region
        %s352 = ssub.s32 %s18, 1
        %s353 = smul.u32 16, %s28
        %p354 = scmp.lt.s32.totalorder %s353, 63
        %s355 = scalar_select %p354, %s353, 63
        %s356 = smul.addr %s355, 8
        %s357 = scalar_lea.vmem %s0, %s356
        %p358 = pneg %p56
        %p359 = pneg %p53
        %s360 = smul.u32 16, %s28
        %p361 = scmp.lt.s32.totalorder %s360, 63
        %s362 = scalar_select %p361, %s360, 63
        %s363 = smul.addr %s362, 8
        %s364 = scalar_lea.vmem %s1, %s363
        %p365 = pneg %p82
        %p366 = pneg %p79
        %s367 = smul.u32 16, %s28
        %p368 = scmp.lt.s32.totalorder %s367, 63
        %s369 = scalar_select %p368, %s367, 63
        %s370 = smul.addr %s369, 8
        %s371 = scalar_lea.vmem %s2, %s370
        %p372 = pneg %p108
        %p373 = pneg %p105
        %p374 = pneg %p129
        %p375 = pneg %p126
        %p376 = pneg %p150
        %p377 = pneg %p147
        %s378 = smul.u32 16, %s27
        %p379 = scmp.lt.s32.totalorder %s378, 31
        %s380 = scalar_select %p379, %s378, 31
        %s381 = smul.addr %s380, 8
        %s382 = scalar_lea.vmem %s5, %s381
        %p383 = pneg %p176
        %p384 = pneg %p173
        %p385 = pneg %p197
        %p386 = pneg %p194
        %s387 = smul.u32 16, %s27
        %p388 = scmp.lt.s32.totalorder %s387, 31
        %s389 = scalar_select %p388, %s387, 31
        %s390 = smul.addr %s389, 8
        %s391 = scalar_lea.vmem %s7, %s390
        %p392 = pneg %p223
        %p393 = pneg %p220
        %p394 = pneg %p244
        %p395 = pneg %p241
        %p396 = pneg %p270
        %p397 = pneg %p267
        %s398 = sand.u32 %s257, 1
        %s399 = scalar_lea.sflag [#allocation4], %s398
        %s400 = sand.u32 %s257, 1
        %s401 = smul.addr %s400, 128
        %s402 = scalar_lea.vmem [#allocation3], %s401
        %s403 = smul.u32 16, %s28
        %p404 = scmp.lt.s32.totalorder %s403, 63
        %s405 = scalar_select %p404, %s403, 63
        %s406 = smul.addr %s405, 8
        %s407 = scalar_lea.vmem %s0, %s406
        %s408 = smul.u32 16, %s28
        %s409 = smul.u32 16, %s28
        %p410 = scmp.lt.s32.totalorder %s409, 63
        %s411 = scalar_select %p410, %s409, 63
        %s412 = smul.addr %s411, 8
        %s413 = scalar_lea.vmem %s1, %s412
        %s414 = smul.u32 16, %s28
        %s415 = smul.u32 16, %s28
        %p416 = scmp.lt.s32.totalorder %s415, 63
        %s417 = scalar_select %p416, %s415, 63
        %s418 = smul.addr %s417, 8
        %s419 = scalar_lea.vmem %s2, %s418
        %s420 = smul.u32 16, %s28
        %s421 = smul.u32 16, %s27
        %p422 = scmp.lt.s32.totalorder %s421, 31
        %s423 = scalar_select %p422, %s421, 31
        %s424 = smul.addr %s423, 8
        %s425 = scalar_lea.vmem %s5, %s424
        %s426 = smul.u32 16, %s27
        %s427 = smul.u32 16, %s27
        %p428 = scmp.lt.s32.totalorder %s427, 31
        %s429 = scalar_select %p428, %s427, 31
        %s430 = smul.addr %s429, 8
        %s431 = scalar_lea.vmem %s7, %s430
        %s432 = smul.u32 16, %s27
        %s433 = smul.u32 16, %s27
        %p435 = scmp.eq.s32.totalorder %s28, 0
        // Predicated region
        $region57: #{tpu_custom_call.1} parent=55 // pred_check
          %p436 = pneg %p435
        $region58: #{tpu_custom_call.1} parent=55 // pred_check_branch
          %438 = sbr.rel (%p436) target = $region60
        $region59: #{tpu_custom_call.1} parent=55 // pred_region
          %439 = vst [vmem:[#allocation2] sm:$0xff] 0.0
          %440 = vst [vmem:[#allocation2 + $0x8] sm:$0xff] 0.0
          %441 = vst [vmem:[#allocation2 + $0x10] sm:$0xff] 0.0
          %442 = vst [vmem:[#allocation2 + $0x18] sm:$0xff] 0.0
          %443 = vst [vmem:[#allocation2 + $0x20] sm:$0xff] 0.0
          %444 = vst [vmem:[#allocation2 + $0x28] sm:$0xff] 0.0
          %445 = vst [vmem:[#allocation2 + $0x30] sm:$0xff] 0.0
          %446 = vst [vmem:[#allocation2 + $0x38] sm:$0xff] 0.0
          %447 = vst [vmem:[#allocation2 + $0x40] sm:$0xff] 0.0
          %448 = vst [vmem:[#allocation2 + $0x48] sm:$0xff] 0.0
          %449 = vst [vmem:[#allocation2 + $0x50] sm:$0xff] 0.0
          %450 = vst [vmem:[#allocation2 + $0x58] sm:$0xff] 0.0
          %451 = vst [vmem:[#allocation2 + $0x60] sm:$0xff] 0.0
          %452 = vst [vmem:[#allocation2 + $0x68] sm:$0xff] 0.0
          %453 = vst [vmem:[#allocation2 + $0x70] sm:$0xff] 0.0
          %454 = vst [vmem:[#allocation2 + $0x78] sm:$0xff] 0.0
        $region60: #{tpu_custom_call.1} parent=55 // pred_fallthru
          _
        %v455 = vld [vmem:[%s407] sm:$0xff]
        %v456 = vld [vmem:[%s407 + $0x8] sm:$0xff]
        %v457 = vld [vmem:[%s407 + $0x10] sm:$0xff]
        %v458 = vld [vmem:[%s407 + $0x18] sm:$0xff]
        %v459 = vld [vmem:[%s407 + $0x20] sm:$0xff]
        %v460 = vld [vmem:[%s407 + $0x28] sm:$0xff]
        %v461 = vld [vmem:[%s407 + $0x30] sm:$0xff]
        %v462 = vld [vmem:[%s407 + $0x38] sm:$0xff]
        %v463 = vld [vmem:[%s407 + $0x40] sm:$0xff]
        %v464 = vld [vmem:[%s407 + $0x48] sm:$0xff]
        %v465 = vld [vmem:[%s407 + $0x50] sm:$0xff]
        %v466 = vld [vmem:[%s407 + $0x58] sm:$0xff]
        %v467 = vld [vmem:[%s407 + $0x60] sm:$0xff]
        %v468 = vld [vmem:[%s407 + $0x68] sm:$0xff]
        %v469 = vld [vmem:[%s407 + $0x70] sm:$0xff]
        %v470 = vld [vmem:[%s407 + $0x78] sm:$0xff]
        %v471 = vld [vmem:[%s413] sm:$0xff]
        %v472 = vld [vmem:[%s413 + $0x8] sm:$0xff]
        %v473 = vld [vmem:[%s413 + $0x10] sm:$0xff]
        %v474 = vld [vmem:[%s413 + $0x18] sm:$0xff]
        %v475 = vld [vmem:[%s413 + $0x20] sm:$0xff]
        %v476 = vld [vmem:[%s413 + $0x28] sm:$0xff]
        %v477 = vld [vmem:[%s413 + $0x30] sm:$0xff]
        %v478 = vld [vmem:[%s413 + $0x38] sm:$0xff]
        %v479 = vld [vmem:[%s413 + $0x40] sm:$0xff]
        %v480 = vld [vmem:[%s413 + $0x48] sm:$0xff]
        %v481 = vld [vmem:[%s413 + $0x50] sm:$0xff]
        %v482 = vld [vmem:[%s413 + $0x58] sm:$0xff]
        %v483 = vld [vmem:[%s413 + $0x60] sm:$0xff]
        %v484 = vld [vmem:[%s413 + $0x68] sm:$0xff]
        %v485 = vld [vmem:[%s413 + $0x70] sm:$0xff]
        %v486 = vld [vmem:[%s413 + $0x78] sm:$0xff]
        %v487 = vld [vmem:[%s419] sm:$0xff]
        %v488 = vld [vmem:[%s419 + $0x8] sm:$0xff]
        %v489 = vld [vmem:[%s419 + $0x10] sm:$0xff]
        %v490 = vld [vmem:[%s419 + $0x18] sm:$0xff]
        %v491 = vld [vmem:[%s419 + $0x20] sm:$0xff]
        %v492 = vld [vmem:[%s419 + $0x28] sm:$0xff]
        %v493 = vld [vmem:[%s419 + $0x30] sm:$0xff]
        %v494 = vld [vmem:[%s419 + $0x38] sm:$0xff]
        %v495 = vld [vmem:[%s419 + $0x40] sm:$0xff]
        %v496 = vld [vmem:[%s419 + $0x48] sm:$0xff]
        %v497 = vld [vmem:[%s419 + $0x50] sm:$0xff]
        %v498 = vld [vmem:[%s419 + $0x58] sm:$0xff]
        %v499 = vld [vmem:[%s419 + $0x60] sm:$0xff]
        %v500 = vld [vmem:[%s419 + $0x68] sm:$0xff]
        %v501 = vld [vmem:[%s419 + $0x70] sm:$0xff]
        %v502 = vld [vmem:[%s419 + $0x78] sm:$0xff]
        %v503 = vlaneseq
        %v504 = vand.u32 %v503, 127
        %v505 = vadd.s32 %v504, 128
        %506 = vset.pattern.permute.xlu0 0
        %507 = vperm.xlu0 %506, %v455
        %v508 = vpop.permute.xlu0 %507
        %509 = vset.pattern.permute.xlu0 0
        %510 = vperm.xlu0 %509, %v456
        %v511 = vpop.permute.xlu0 %510
        %512 = vset.pattern.permute.xlu0 0
        %513 = vperm.xlu0 %512, %v457
        %v514 = vpop.permute.xlu0 %513
        %515 = vset.pattern.permute.xlu0 0
        %516 = vperm.xlu0 %515, %v458
        %v517 = vpop.permute.xlu0 %516
        %518 = vset.pattern.permute.xlu0 0
        %519 = vperm.xlu0 %518, %v459
        %v520 = vpop.permute.xlu0 %519
        %521 = vset.pattern.permute.xlu0 0
        %522 = vperm.xlu0 %521, %v460
        %v523 = vpop.permute.xlu0 %522
        %524 = vset.pattern.permute.xlu0 0
        %525 = vperm.xlu0 %524, %v461
        %v526 = vpop.permute.xlu0 %525
        %527 = vset.pattern.permute.xlu0 0
        %528 = vperm.xlu0 %527, %v462
        %v529 = vpop.permute.xlu0 %528
        %530 = vset.pattern.permute.xlu0 0
        %531 = vperm.xlu0 %530, %v463
        %v532 = vpop.permute.xlu0 %531
        %533 = vset.pattern.permute.xlu0 0
        %534 = vperm.xlu0 %533, %v464
        %v535 = vpop.permute.xlu0 %534
        %536 = vset.pattern.permute.xlu0 0
        %537 = vperm.xlu0 %536, %v465
        %v538 = vpop.permute.xlu0 %537
        %539 = vset.pattern.permute.xlu0 0
        %540 = vperm.xlu0 %539, %v466
        %v541 = vpop.permute.xlu0 %540
        %542 = vset.pattern.permute.xlu0 0
        %543 = vperm.xlu0 %542, %v467
        %v544 = vpop.permute.xlu0 %543
        %545 = vset.pattern.permute.xlu0 0
        %546 = vperm.xlu0 %545, %v468
        %v547 = vpop.permute.xlu0 %546
        %548 = vset.pattern.permute.xlu0 0
        %549 = vperm.xlu0 %548, %v469
        %v550 = vpop.permute.xlu0 %549
        %551 = vset.pattern.permute.xlu0 0
        %552 = vperm.xlu0 %551, %v470
        %v553 = vpop.permute.xlu0 %552
        %vm554 = vcmp.eq.s32.totalorder %v508, %v504
        %vm555 = vcmp.eq.s32.totalorder %v508, %v505
        %vm556 = vcmp.eq.s32.totalorder %v511, %v504
        %vm557 = vcmp.eq.s32.totalorder %v511, %v505
        %vm558 = vcmp.eq.s32.totalorder %v514, %v504
        %vm559 = vcmp.eq.s32.totalorder %v514, %v505
        %vm560 = vcmp.eq.s32.totalorder %v517, %v504
        %vm561 = vcmp.eq.s32.totalorder %v517, %v505
        %vm562 = vcmp.eq.s32.totalorder %v520, %v504
        %vm563 = vcmp.eq.s32.totalorder %v520, %v505
        %vm564 = vcmp.eq.s32.totalorder %v523, %v504
        %vm565 = vcmp.eq.s32.totalorder %v523, %v505
        %vm566 = vcmp.eq.s32.totalorder %v526, %v504
        %vm567 = vcmp.eq.s32.totalorder %v526, %v505
        %vm568 = vcmp.eq.s32.totalorder %v529, %v504
        %vm569 = vcmp.eq.s32.totalorder %v529, %v505
        %vm570 = vcmp.eq.s32.totalorder %v532, %v504
        %vm571 = vcmp.eq.s32.totalorder %v532, %v505
        %vm572 = vcmp.eq.s32.totalorder %v535, %v504
        %vm573 = vcmp.eq.s32.totalorder %v535, %v505
        %vm574 = vcmp.eq.s32.totalorder %v538, %v504
        %vm575 = vcmp.eq.s32.totalorder %v538, %v505
        %vm576 = vcmp.eq.s32.totalorder %v541, %v504
        %vm577 = vcmp.eq.s32.totalorder %v541, %v505
        %vm578 = vcmp.eq.s32.totalorder %v544, %v504
        %vm579 = vcmp.eq.s32.totalorder %v544, %v505
        %vm580 = vcmp.eq.s32.totalorder %v547, %v504
        %vm581 = vcmp.eq.s32.totalorder %v547, %v505
        %vm582 = vcmp.eq.s32.totalorder %v550, %v504
        %vm583 = vcmp.eq.s32.totalorder %v550, %v505
        %vm584 = vcmp.eq.s32.totalorder %v553, %v504
        %vm585 = vcmp.eq.s32.totalorder %v553, %v505
        %v586 = vsel %vm554, 1, 0
        %v587 = vsel %vm555, 1, 0
        %v588 = vsel %vm556, 1, 0
        %v589 = vsel %vm557, 1, 0
        %v590 = vsel %vm558, 1, 0
        %v591 = vsel %vm559, 1, 0
        %v592 = vsel %vm560, 1, 0
        %v593 = vsel %vm561, 1, 0
        %v594 = vsel %vm562, 1, 0
        %v595 = vsel %vm563, 1, 0
        %v596 = vsel %vm564, 1, 0
        %v597 = vsel %vm565, 1, 0
        %v598 = vsel %vm566, 1, 0
        %v599 = vsel %vm567, 1, 0
        %v600 = vsel %vm568, 1, 0
        %v601 = vsel %vm569, 1, 0
        %v602 = vsel %vm570, 1, 0
        %v603 = vsel %vm571, 1, 0
        %v604 = vsel %vm572, 1, 0
        %v605 = vsel %vm573, 1, 0
        %v606 = vsel %vm574, 1, 0
        %v607 = vsel %vm575, 1, 0
        %v608 = vsel %vm576, 1, 0
        %v609 = vsel %vm577, 1, 0
        %v610 = vsel %vm578, 1, 0
        %v611 = vsel %vm579, 1, 0
        %v612 = vsel %vm580, 1, 0
        %v613 = vsel %vm581, 1, 0
        %v614 = vsel %vm582, 1, 0
        %v615 = vsel %vm583, 1, 0
        %v616 = vsel %vm584, 1, 0
        %v617 = vsel %vm585, 1, 0
        %v618 = vcvt.s32.f32 %v586
        %v619 = vcvt.s32.f32 %v587
        %v620 = vcvt.s32.f32 %v588
        %v621 = vcvt.s32.f32 %v589
        %v622 = vcvt.s32.f32 %v590
        %v623 = vcvt.s32.f32 %v591
        %v624 = vcvt.s32.f32 %v592
        %v625 = vcvt.s32.f32 %v593
        %v626 = vcvt.s32.f32 %v594
        %v627 = vcvt.s32.f32 %v595
        %v628 = vcvt.s32.f32 %v596
        %v629 = vcvt.s32.f32 %v597
        %v630 = vcvt.s32.f32 %v598
        %v631 = vcvt.s32.f32 %v599
        %v632 = vcvt.s32.f32 %v600
        %v633 = vcvt.s32.f32 %v601
        %v634 = vcvt.s32.f32 %v602
        %v635 = vcvt.s32.f32 %v603
        %v636 = vcvt.s32.f32 %v604
        %v637 = vcvt.s32.f32 %v605
        %v638 = vcvt.s32.f32 %v606
        %v639 = vcvt.s32.f32 %v607
        %v640 = vcvt.s32.f32 %v608
        %v641 = vcvt.s32.f32 %v609
        %v642 = vcvt.s32.f32 %v610
        %v643 = vcvt.s32.f32 %v611
        %v644 = vcvt.s32.f32 %v612
        %v645 = vcvt.s32.f32 %v613
        %v646 = vcvt.s32.f32 %v614
        %v647 = vcvt.s32.f32 %v615
        %v648 = vcvt.s32.f32 %v616
        %v649 = vcvt.s32.f32 %v617
        %v650 = vpack.c.bf16 %v620, %v618
        %v651 = vpack.c.bf16 %v621, %v619
        %v652 = vpack.c.bf16 %v624, %v622
        %v653 = vpack.c.bf16 %v625, %v623
        %v654 = vpack.c.bf16 %v628, %v626
        %v655 = vpack.c.bf16 %v629, %v627
        %v656 = vpack.c.bf16 %v632, %v630
        %v657 = vpack.c.bf16 %v633, %v631
        %v658 = vpack.c.bf16 %v636, %v634
        %v659 = vpack.c.bf16 %v637, %v635
        %v660 = vpack.c.bf16 %v640, %v638
        %v661 = vpack.c.bf16 %v641, %v639
        %v662 = vpack.c.bf16 %v644, %v642
        %v663 = vpack.c.bf16 %v645, %v643
        %v664 = vpack.c.bf16 %v648, %v646
        %v665 = vpack.c.bf16 %v649, %v647
        %666 = vset.pattern.permute.xlu0 0
        %667 = vperm.xlu0 %666, %v471
        %v668 = vpop.permute.xlu0 %667
        %669 = vset.pattern.permute.xlu0 0
        %670 = vperm.xlu0 %669, %v472
        %v671 = vpop.permute.xlu0 %670
        %672 = vset.pattern.permute.xlu0 0
        %673 = vperm.xlu0 %672, %v473
        %v674 = vpop.permute.xlu0 %673
        %675 = vset.pattern.permute.xlu0 0
        %676 = vperm.xlu0 %675, %v474
        %v677 = vpop.permute.xlu0 %676
        %678 = vset.pattern.permute.xlu0 0
        %679 = vperm.xlu0 %678, %v475
        %v680 = vpop.permute.xlu0 %679
        %681 = vset.pattern.permute.xlu0 0
        %682 = vperm.xlu0 %681, %v476
        %v683 = vpop.permute.xlu0 %682
        %684 = vset.pattern.permute.xlu0 0
        %685 = vperm.xlu0 %684, %v477
        %v686 = vpop.permute.xlu0 %685
        %687 = vset.pattern.permute.xlu0 0
        %688 = vperm.xlu0 %687, %v478
        %v689 = vpop.permute.xlu0 %688
        %690 = vset.pattern.permute.xlu0 0
        %691 = vperm.xlu0 %690, %v479
        %v692 = vpop.permute.xlu0 %691
        %693 = vset.pattern.permute.xlu0 0
        %694 = vperm.xlu0 %693, %v480
        %v695 = vpop.permute.xlu0 %694
        %696 = vset.pattern.permute.xlu0 0
        %697 = vperm.xlu0 %696, %v481
        %v698 = vpop.permute.xlu0 %697
        %699 = vset.pattern.permute.xlu0 0
        %700 = vperm.xlu0 %699, %v482
        %v701 = vpop.permute.xlu0 %700
        %702 = vset.pattern.permute.xlu0 0
        %703 = vperm.xlu0 %702, %v483
        %v704 = vpop.permute.xlu0 %703
        %705 = vset.pattern.permute.xlu0 0
        %706 = vperm.xlu0 %705, %v484
        %v707 = vpop.permute.xlu0 %706
        %708 = vset.pattern.permute.xlu0 0
        %709 = vperm.xlu0 %708, %v485
        %v710 = vpop.permute.xlu0 %709
        %711 = vset.pattern.permute.xlu0 0
        %712 = vperm.xlu0 %711, %v486
        %v713 = vpop.permute.xlu0 %712
        %vm714 = vcmp.eq.s32.totalorder %v668, %v504
        %vm715 = vcmp.eq.s32.totalorder %v671, %v504
        %vm716 = vcmp.eq.s32.totalorder %v674, %v504
        %vm717 = vcmp.eq.s32.totalorder %v677, %v504
        %vm718 = vcmp.eq.s32.totalorder %v680, %v504
        %vm719 = vcmp.eq.s32.totalorder %v683, %v504
        %vm720 = vcmp.eq.s32.totalorder %v686, %v504
        %vm721 = vcmp.eq.s32.totalorder %v689, %v504
        %vm722 = vcmp.eq.s32.totalorder %v692, %v504
        %vm723 = vcmp.eq.s32.totalorder %v695, %v504
        %vm724 = vcmp.eq.s32.totalorder %v698, %v504
        %vm725 = vcmp.eq.s32.totalorder %v701, %v504
        %vm726 = vcmp.eq.s32.totalorder %v704, %v504
        %vm727 = vcmp.eq.s32.totalorder %v707, %v504
        %vm728 = vcmp.eq.s32.totalorder %v710, %v504
        %vm729 = vcmp.eq.s32.totalorder %v713, %v504
        %v730 = vsel %vm714, 1, 0
        %v731 = vsel %vm715, 1, 0
        %v732 = vsel %vm716, 1, 0
        %v733 = vsel %vm717, 1, 0
        %v734 = vsel %vm718, 1, 0
        %v735 = vsel %vm719, 1, 0
        %v736 = vsel %vm720, 1, 0
        %v737 = vsel %vm721, 1, 0
        %v738 = vsel %vm722, 1, 0
        %v739 = vsel %vm723, 1, 0
        %v740 = vsel %vm724, 1, 0
        %v741 = vsel %vm725, 1, 0
        %v742 = vsel %vm726, 1, 0
        %v743 = vsel %vm727, 1, 0
        %v744 = vsel %vm728, 1, 0
        %v745 = vsel %vm729, 1, 0
        %v746 = vcvt.s32.f32 %v730
        %v747 = vcvt.s32.f32 %v731
        %v748 = vcvt.s32.f32 %v732
        %v749 = vcvt.s32.f32 %v733
        %v750 = vcvt.s32.f32 %v734
        %v751 = vcvt.s32.f32 %v735
        %v752 = vcvt.s32.f32 %v736
        %v753 = vcvt.s32.f32 %v737
        %v754 = vcvt.s32.f32 %v738
        %v755 = vcvt.s32.f32 %v739
        %v756 = vcvt.s32.f32 %v740
        %v757 = vcvt.s32.f32 %v741
        %v758 = vcvt.s32.f32 %v742
        %v759 = vcvt.s32.f32 %v743
        %v760 = vcvt.s32.f32 %v744
        %v761 = vcvt.s32.f32 %v745
        %v762 = vpack.c.bf16 %v747, %v746
        %v763 = vpack.c.bf16 %v749, %v748
        %v764 = vpack.c.bf16 %v751, %v750
        %v765 = vpack.c.bf16 %v753, %v752
        %v766 = vpack.c.bf16 %v755, %v754
        %v767 = vpack.c.bf16 %v757, %v756
        %v768 = vpack.c.bf16 %v759, %v758
        %v769 = vpack.c.bf16 %v761, %v760
        %v770 = vld [vmem:[%s3] sm:$0xf]
        %v771 = vld [vmem:[%s3 + $0x4] sm:$0xf]
        %v772 = vld [vmem:[%s3 + $0x8] sm:$0xf]
        %v773 = vld [vmem:[%s3 + $0xc] sm:$0xf]
        %v774 = vld [vmem:[%s3 + $0x10] sm:$0xf]
        %v775 = vld [vmem:[%s3 + $0x14] sm:$0xf]
        %v776 = vld [vmem:[%s3 + $0x18] sm:$0xf]
        %v777 = vld [vmem:[%s3 + $0x1c] sm:$0xf]
        %v778 = vld [vmem:[%s3 + $0x20] sm:$0xf]
        %v779 = vld [vmem:[%s3 + $0x24] sm:$0xf]
        %v780 = vld [vmem:[%s3 + $0x28] sm:$0xf]
        %v781 = vld [vmem:[%s3 + $0x2c] sm:$0xf]
        %v782 = vld [vmem:[%s3 + $0x30] sm:$0xf]
        %v783 = vld [vmem:[%s3 + $0x34] sm:$0xf]
        %v784 = vld [vmem:[%s3 + $0x38] sm:$0xf]
        %v785 = vld [vmem:[%s3 + $0x3c] sm:$0xf]
        %v786 = vld [vmem:[%s3 + $0x40] sm:$0xf]
        %v787 = vld [vmem:[%s3 + $0x44] sm:$0xf]
        %v788 = vld [vmem:[%s3 + $0x48] sm:$0xf]
        %v789 = vld [vmem:[%s3 + $0x4c] sm:$0xf]
        %v790 = vld [vmem:[%s3 + $0x50] sm:$0xf]
        %v791 = vld [vmem:[%s3 + $0x54] sm:$0xf]
        %v792 = vld [vmem:[%s3 + $0x58] sm:$0xf]
        %v793 = vld [vmem:[%s3 + $0x5c] sm:$0xf]
        %v794 = vld [vmem:[%s3 + $0x60] sm:$0xf]
        %v795 = vld [vmem:[%s3 + $0x64] sm:$0xf]
        %v796 = vld [vmem:[%s3 + $0x68] sm:$0xf]
        %v797 = vld [vmem:[%s3 + $0x6c] sm:$0xf]
        %v798 = vld [vmem:[%s3 + $0x70] sm:$0xf]
        %v799 = vld [vmem:[%s3 + $0x74] sm:$0xf]
        %v800 = vld [vmem:[%s3 + $0x78] sm:$0xf]
        %v801 = vld [vmem:[%s3 + $0x7c] sm:$0xf]
        %v802 = vld [vmem:[%s4] sm:$0xf]
        %v803 = vld [vmem:[%s4 + $0x4] sm:$0xf]
        %v804 = vld [vmem:[%s4 + $0x8] sm:$0xf]
        %v805 = vld [vmem:[%s4 + $0xc] sm:$0xf]
        %v806 = vld [vmem:[%s4 + $0x10] sm:$0xf]
        %v807 = vld [vmem:[%s4 + $0x14] sm:$0xf]
        %v808 = vld [vmem:[%s4 + $0x18] sm:$0xf]
        %v809 = vld [vmem:[%s4 + $0x1c] sm:$0xf]
        %v810 = vld [vmem:[%s4 + $0x20] sm:$0xf]
        %v811 = vld [vmem:[%s4 + $0x24] sm:$0xf]
        %v812 = vld [vmem:[%s4 + $0x28] sm:$0xf]
        %v813 = vld [vmem:[%s4 + $0x2c] sm:$0xf]
        %v814 = vld [vmem:[%s4 + $0x30] sm:$0xf]
        %v815 = vld [vmem:[%s4 + $0x34] sm:$0xf]
        %v816 = vld [vmem:[%s4 + $0x38] sm:$0xf]
        %v817 = vld [vmem:[%s4 + $0x3c] sm:$0xf]
        %v834 = vunpack.c.l.b16 %v802
        %v835 = vunpack.c.l.b16 %v803
        %v836 = vunpack.c.l.b16 %v804
        %v837 = vunpack.c.l.b16 %v805
        %v838 = vunpack.c.l.b16 %v806
        %v839 = vunpack.c.l.b16 %v807
        %v840 = vunpack.c.l.b16 %v808
        %v841 = vunpack.c.l.b16 %v809
        %v842 = vunpack.c.l.b16 %v810
        %v843 = vunpack.c.l.b16 %v811
        %v844 = vunpack.c.l.b16 %v812
        %v845 = vunpack.c.l.b16 %v813
        %v846 = vunpack.c.l.b16 %v814
        %v847 = vunpack.c.l.b16 %v815
        %v848 = vunpack.c.l.b16 %v816
        %v849 = vunpack.c.l.b16 %v817
        %v850 = vpack.c.b16 %v835, %v834
        %v851 = vpack.c.b16 %v837, %v836
        %v852 = vpack.c.b16 %v839, %v838
        %v853 = vpack.c.b16 %v841, %v840
        %v854 = vpack.c.b16 %v843, %v842
        %v855 = vpack.c.b16 %v845, %v844
        %v856 = vpack.c.b16 %v847, %v846
        %v857 = vpack.c.b16 %v849, %v848
        %866 = vmatprep.subr.bf16.mxu0 0
        %867 = vmatpush1.bf16.msra.mxu0 %v857
        %868 = vmatprep.subr.bf16.mxu0 0
        %869 = vmatpush1.bf16.msra.mxu0 %v856
        %870 = vmatprep.subr.bf16.mxu0 0
        %871 = vmatpush1.bf16.msra.mxu0 %v855
        %872 = vmatprep.subr.bf16.mxu0 0
        %873 = vmatpush1.bf16.msra.mxu0 %v854
        %874 = vmatprep.subr.bf16.mxu0 0
        %875 = vmatpush1.bf16.msra.mxu0 %v853
        %876 = vmatprep.subr.bf16.mxu0 0
        %877 = vmatpush1.bf16.msra.mxu0 %v852
        %878 = vmatprep.subr.bf16.mxu0 0
        %879 = vmatpush1.bf16.msra.mxu0 %v851
        %880 = vmatprep.subr.bf16.mxu0 0
        %881 = vmatpush1.bf16.msra.mxu0 %v850
        %882 = vmatprep.subr.bf16.mxu0 0
        %883 = vmatpush2.bf16.msra.mxu0 0
        %884 = vmatprep.subr.bf16.mxu0 0
        %885 = vmatpush2.bf16.msra.mxu0 0
        %886 = vmatprep.subr.bf16.mxu0 0
        %887 = vmatpush2.bf16.msra.mxu0 0
        %888 = vmatprep.subr.bf16.mxu0 0
        %889 = vmatpush2.bf16.msra.mxu0 0
        %890 = vmatprep.subr.bf16.mxu0 0
        %891 = vmatpush2.bf16.msra.mxu0 0
        %892 = vmatprep.subr.bf16.mxu0 0
        %893 = vmatpush2.bf16.msra.mxu0 0
        %894 = vmatprep.subr.bf16.mxu0 0
        %895 = vmatpush2.bf16.msra.mxu0 0
        %896 = vmatprep.subr.bf16.mxu0 0
        %897 = vmatpush2.bf16.msra.mxu0 0
        %898 = vmatprep.mubr.bf16.mxu0 0
        %899 = vmatmul.mubr.bf16.gmra.mxu0 %v762
        %v900 = vpop.f32.mrf.mxu0
        %v901 = vadd.f32 0.0, %v900
        %v902 = vpop.f32.mrf.mxu0
        %v903 = vpop.f32.mrf.mxu0
        %v904 = vadd.f32 0.0, %v903
        %v905 = vpop.f32.mrf.mxu0
        %906 = vmatprep.mubr.bf16.mxu0 0
        %907 = vmatmul.mubr.bf16.gmra.mxu0 %v763
        %v908 = vpop.f32.mrf.mxu0
        %v909 = vadd.f32 0.0, %v908
        %v910 = vpop.f32.mrf.mxu0
        %v911 = vpop.f32.mrf.mxu0
        %v912 = vadd.f32 0.0, %v911
        %v913 = vpop.f32.mrf.mxu0
        %914 = vmatprep.mubr.bf16.mxu0 0
        %915 = vmatmul.mubr.bf16.gmra.mxu0 %v764
        %v916 = vpop.f32.mrf.mxu0
        %v917 = vadd.f32 0.0, %v916
        %v918 = vpop.f32.mrf.mxu0
        %v919 = vpop.f32.mrf.mxu0
        %v920 = vadd.f32 0.0, %v919
        %v921 = vpop.f32.mrf.mxu0
        %922 = vmatprep.mubr.bf16.mxu0 0
        %923 = vmatmul.mubr.bf16.gmra.mxu0 %v765
        %v924 = vpop.f32.mrf.mxu0
        %v925 = vadd.f32 0.0, %v924
        %v926 = vpop.f32.mrf.mxu0
        %v927 = vpop.f32.mrf.mxu0
        %v928 = vadd.f32 0.0, %v927
        %v929 = vpop.f32.mrf.mxu0
        %930 = vmatprep.mubr.bf16.mxu0 0
        %931 = vmatmul.mubr.bf16.gmra.mxu0 %v766
        %v932 = vpop.f32.mrf.mxu0
        %v933 = vadd.f32 0.0, %v932
        %v934 = vpop.f32.mrf.mxu0
        %v935 = vpop.f32.mrf.mxu0
        %v936 = vadd.f32 0.0, %v935
        %v937 = vpop.f32.mrf.mxu0
        %938 = vmatprep.mubr.bf16.mxu0 0
        %939 = vmatmul.mubr.bf16.gmra.mxu0 %v767
        %v940 = vpop.f32.mrf.mxu0
        %v941 = vadd.f32 0.0, %v940
        %v942 = vpop.f32.mrf.mxu0
        %v943 = vpop.f32.mrf.mxu0
        %v944 = vadd.f32 0.0, %v943
        %v945 = vpop.f32.mrf.mxu0
        %946 = vmatprep.mubr.bf16.mxu0 0
        %947 = vmatmul.mubr.bf16.gmra.mxu0 %v768
        %v948 = vpop.f32.mrf.mxu0
        %v949 = vadd.f32 0.0, %v948
        %v950 = vpop.f32.mrf.mxu0
        %v951 = vpop.f32.mrf.mxu0
        %v952 = vadd.f32 0.0, %v951
        %v953 = vpop.f32.mrf.mxu0
        %954 = vmatprep.mubr.bf16.mxu0 0
        %955 = vmatmul.mubr.bf16.gmra.mxu0 %v769
        %v956 = vpop.f32.mrf.mxu0
        %v957 = vadd.f32 0.0, %v956
        %v958 = vpop.f32.mrf.mxu0
        %v959 = vpop.f32.mrf.mxu0
        %v960 = vadd.f32 0.0, %v959
        %v961 = vpop.f32.mrf.mxu0
        %962 = vdwg.mxu0
        %v995 = vunpack.c.l.b16 %v770
        %v996 = vunpack.c.l.b16 %v771
        %v997 = vunpack.c.l.b16 %v772
        %v998 = vunpack.c.l.b16 %v773
        %v999 = vunpack.c.l.b16 %v774
        %v1000 = vunpack.c.l.b16 %v775
        %v1001 = vunpack.c.l.b16 %v776
        %v1002 = vunpack.c.l.b16 %v777
        %v1003 = vunpack.c.l.b16 %v778
        %v1004 = vunpack.c.l.b16 %v779
        %v1005 = vunpack.c.l.b16 %v780
        %v1006 = vunpack.c.l.b16 %v781
        %v1007 = vunpack.c.l.b16 %v782
        %v1008 = vunpack.c.l.b16 %v783
        %v1009 = vunpack.c.l.b16 %v784
        %v1010 = vunpack.c.l.b16 %v785
        %v1011 = vunpack.c.l.b16 %v786
        %v1012 = vunpack.c.l.b16 %v787
        %v1013 = vunpack.c.l.b16 %v788
        %v1014 = vunpack.c.l.b16 %v789
        %v1015 = vunpack.c.l.b16 %v790
        %v1016 = vunpack.c.l.b16 %v791
        %v1017 = vunpack.c.l.b16 %v792
        %v1018 = vunpack.c.l.b16 %v793
        %v1019 = vunpack.c.l.b16 %v794
        %v1020 = vunpack.c.l.b16 %v795
        %v1021 = vunpack.c.l.b16 %v796
        %v1022 = vunpack.c.l.b16 %v797
        %v1023 = vunpack.c.l.b16 %v798
        %v1024 = vunpack.c.l.b16 %v799
        %v1025 = vunpack.c.l.b16 %v800
        %v1026 = vunpack.c.l.b16 %v801
        %v1027 = vpack.c.b16 %v996, %v995
        %v1028 = vpack.c.b16 %v998, %v997
        %v1029 = vpack.c.b16 %v1000, %v999
        %v1030 = vpack.c.b16 %v1002, %v1001
        %v1031 = vpack.c.b16 %v1004, %v1003
        %v1032 = vpack.c.b16 %v1006, %v1005
        %v1033 = vpack.c.b16 %v1008, %v1007
        %v1034 = vpack.c.b16 %v1010, %v1009
        %v1035 = vpack.c.b16 %v1012, %v1011
        %v1036 = vpack.c.b16 %v1014, %v1013
        %v1037 = vpack.c.b16 %v1016, %v1015
        %v1038 = vpack.c.b16 %v1018, %v1017
        %v1039 = vpack.c.b16 %v1020, %v1019
        %v1040 = vpack.c.b16 %v1022, %v1021
        %v1041 = vpack.c.b16 %v1024, %v1023
        %v1042 = vpack.c.b16 %v1026, %v1025
        %1059 = vmatprep.subr.bf16.mxu0 0
        %1060 = vmatpush1.bf16.msra.mxu0 %v1034
        %1061 = vmatprep.subr.bf16.mxu0 0
        %1062 = vmatpush1.bf16.msra.mxu0 %v1033
        %1063 = vmatprep.subr.bf16.mxu0 0
        %1064 = vmatpush1.bf16.msra.mxu0 %v1032
        %1065 = vmatprep.subr.bf16.mxu0 0
        %1066 = vmatpush1.bf16.msra.mxu0 %v1031
        %1067 = vmatprep.subr.bf16.mxu0 0
        %1068 = vmatpush1.bf16.msra.mxu0 %v1030
        %1069 = vmatprep.subr.bf16.mxu0 0
        %1070 = vmatpush1.bf16.msra.mxu0 %v1029
        %1071 = vmatprep.subr.bf16.mxu0 0
        %1072 = vmatpush1.bf16.msra.mxu0 %v1028
        %1073 = vmatprep.subr.bf16.mxu0 0
        %1074 = vmatpush1.bf16.msra.mxu0 %v1027
        %1075 = vmatprep.subr.bf16.mxu0 0
        %1076 = vmatpush2.bf16.msra.mxu0 %v1042
        %1077 = vmatprep.subr.bf16.mxu0 0
        %1078 = vmatpush2.bf16.msra.mxu0 %v1041
        %1079 = vmatprep.subr.bf16.mxu0 0
        %1080 = vmatpush2.bf16.msra.mxu0 %v1040
        %1081 = vmatprep.subr.bf16.mxu0 0
        %1082 = vmatpush2.bf16.msra.mxu0 %v1039
        %1083 = vmatprep.subr.bf16.mxu0 0
        %1084 = vmatpush2.bf16.msra.mxu0 %v1038
        %1085 = vmatprep.subr.bf16.mxu0 0
        %1086 = vmatpush2.bf16.msra.mxu0 %v1037
        %1087 = vmatprep.subr.bf16.mxu0 0
        %1088 = vmatpush2.bf16.msra.mxu0 %v1036
        %1089 = vmatprep.subr.bf16.mxu0 0
        %1090 = vmatpush2.bf16.msra.mxu0 %v1035
        %1091 = vmatprep.mubr.bf16.mxu0 %v651
        %1092 = vmatmul.mubr.bf16.gmra.mxu0 %v650
        %v1093 = vpop.f32.mrf.mxu0
        %v1094 = vadd.f32 %v901, %v1093
        %v1095 = vpop.f32.mrf.mxu0
        %v1096 = vpop.f32.mrf.mxu0
        %v1097 = vadd.f32 %v904, %v1096
        %v1098 = vpop.f32.mrf.mxu0
        %1099 = vmatprep.mubr.bf16.mxu0 %v653
        %1100 = vmatmul.mubr.bf16.gmra.mxu0 %v652
        %v1101 = vpop.f32.mrf.mxu0
        %v1102 = vadd.f32 %v909, %v1101
        %v1103 = vpop.f32.mrf.mxu0
        %v1104 = vpop.f32.mrf.mxu0
        %v1105 = vadd.f32 %v912, %v1104
        %v1106 = vpop.f32.mrf.mxu0
        %1107 = vmatprep.mubr.bf16.mxu0 %v655
        %1108 = vmatmul.mubr.bf16.gmra.mxu0 %v654
        %v1109 = vpop.f32.mrf.mxu0
        %v1110 = vadd.f32 %v917, %v1109
        %v1111 = vpop.f32.mrf.mxu0
        %v1112 = vpop.f32.mrf.mxu0
        %v1113 = vadd.f32 %v920, %v1112
        %v1114 = vpop.f32.mrf.mxu0
        %1115 = vmatprep.mubr.bf16.mxu0 %v657
        %1116 = vmatmul.mubr.bf16.gmra.mxu0 %v656
        %v1117 = vpop.f32.mrf.mxu0
        %v1118 = vadd.f32 %v925, %v1117
        %v1119 = vpop.f32.mrf.mxu0
        %v1120 = vpop.f32.mrf.mxu0
        %v1121 = vadd.f32 %v928, %v1120
        %v1122 = vpop.f32.mrf.mxu0
        %1123 = vmatprep.mubr.bf16.mxu0 %v659
        %1124 = vmatmul.mubr.bf16.gmra.mxu0 %v658
        %v1125 = vpop.f32.mrf.mxu0
        %v1126 = vadd.f32 %v933, %v1125
        %v1127 = vpop.f32.mrf.mxu0
        %v1128 = vpop.f32.mrf.mxu0
        %v1129 = vadd.f32 %v936, %v1128
        %v1130 = vpop.f32.mrf.mxu0
        %1131 = vmatprep.mubr.bf16.mxu0 %v661
        %1132 = vmatmul.mubr.bf16.gmra.mxu0 %v660
        %v1133 = vpop.f32.mrf.mxu0
        %v1134 = vadd.f32 %v941, %v1133
        %v1135 = vpop.f32.mrf.mxu0
        %v1136 = vpop.f32.mrf.mxu0
        %v1137 = vadd.f32 %v944, %v1136
        %v1138 = vpop.f32.mrf.mxu0
        %1139 = vmatprep.mubr.bf16.mxu0 %v663
        %1140 = vmatmul.mubr.bf16.gmra.mxu0 %v662
        %v1141 = vpop.f32.mrf.mxu0
        %v1142 = vadd.f32 %v949, %v1141
        %v1143 = vpop.f32.mrf.mxu0
        %v1144 = vpop.f32.mrf.mxu0
        %v1145 = vadd.f32 %v952, %v1144
        %v1146 = vpop.f32.mrf.mxu0
        %1147 = vmatprep.mubr.bf16.mxu0 %v665
        %1148 = vmatmul.mubr.bf16.gmra.mxu0 %v664
        %v1149 = vpop.f32.mrf.mxu0
        %v1150 = vadd.f32 %v957, %v1149
        %v1151 = vpop.f32.mrf.mxu0
        %v1152 = vpop.f32.mrf.mxu0
        %v1153 = vadd.f32 %v960, %v1152
        %v1154 = vpop.f32.mrf.mxu0
        %1155 = vdwg.mxu0
        %s1156 = smul.u32 %s27, 128
        %v1157 = vstv %s1156
        %v1158 = vadd.s32 %v504, %v1157
        %1159 = vset.pattern.permute.xlu0 0
        %1160 = vperm.xlu0 %1159, %v487
        %v1161 = vpop.permute.xlu0 %1160
        %1162 = vset.pattern.permute.xlu0 0
        %1163 = vperm.xlu0 %1162, %v488
        %v1164 = vpop.permute.xlu0 %1163
        %1165 = vset.pattern.permute.xlu0 0
        %1166 = vperm.xlu0 %1165, %v489
        %v1167 = vpop.permute.xlu0 %1166
        %1168 = vset.pattern.permute.xlu0 0
        %1169 = vperm.xlu0 %1168, %v490
        %v1170 = vpop.permute.xlu0 %1169
        %1171 = vset.pattern.permute.xlu0 0
        %1172 = vperm.xlu0 %1171, %v491
        %v1173 = vpop.permute.xlu0 %1172
        %1174 = vset.pattern.permute.xlu0 0
        %1175 = vperm.xlu0 %1174, %v492
        %v1176 = vpop.permute.xlu0 %1175
        %1177 = vset.pattern.permute.xlu0 0
        %1178 = vperm.xlu0 %1177, %v493
        %v1179 = vpop.permute.xlu0 %1178
        %1180 = vset.pattern.permute.xlu0 0
        %1181 = vperm.xlu0 %1180, %v494
        %v1182 = vpop.permute.xlu0 %1181
        %1183 = vset.pattern.permute.xlu0 0
        %1184 = vperm.xlu0 %1183, %v495
        %v1185 = vpop.permute.xlu0 %1184
        %1186 = vset.pattern.permute.xlu0 0
        %1187 = vperm.xlu0 %1186, %v496
        %v1188 = vpop.permute.xlu0 %1187
        %1189 = vset.pattern.permute.xlu0 0
        %1190 = vperm.xlu0 %1189, %v497
        %v1191 = vpop.permute.xlu0 %1190
        %1192 = vset.pattern.permute.xlu0 0
        %1193 = vperm.xlu0 %1192, %v498
        %v1194 = vpop.permute.xlu0 %1193
        %1195 = vset.pattern.permute.xlu0 0
        %1196 = vperm.xlu0 %1195, %v499
        %v1197 = vpop.permute.xlu0 %1196
        %1198 = vset.pattern.permute.xlu0 0
        %1199 = vperm.xlu0 %1198, %v500
        %v1200 = vpop.permute.xlu0 %1199
        %1201 = vset.pattern.permute.xlu0 0
        %1202 = vperm.xlu0 %1201, %v501
        %v1203 = vpop.permute.xlu0 %1202
        %1204 = vset.pattern.permute.xlu0 0
        %1205 = vperm.xlu0 %1204, %v502
        %v1206 = vpop.permute.xlu0 %1205
        %vm1207 = vcmp.eq.s32.totalorder %v1161, %v1158
        %vm1208 = vcmp.eq.s32.totalorder %v1164, %v1158
        %vm1209 = vcmp.eq.s32.totalorder %v1167, %v1158
        %vm1210 = vcmp.eq.s32.totalorder %v1170, %v1158
        %vm1211 = vcmp.eq.s32.totalorder %v1173, %v1158
        %vm1212 = vcmp.eq.s32.totalorder %v1176, %v1158
        %vm1213 = vcmp.eq.s32.totalorder %v1179, %v1158
        %vm1214 = vcmp.eq.s32.totalorder %v1182, %v1158
        %vm1215 = vcmp.eq.s32.totalorder %v1185, %v1158
        %vm1216 = vcmp.eq.s32.totalorder %v1188, %v1158
        %vm1217 = vcmp.eq.s32.totalorder %v1191, %v1158
        %vm1218 = vcmp.eq.s32.totalorder %v1194, %v1158
        %vm1219 = vcmp.eq.s32.totalorder %v1197, %v1158
        %vm1220 = vcmp.eq.s32.totalorder %v1200, %v1158
        %vm1221 = vcmp.eq.s32.totalorder %v1203, %v1158
        %vm1222 = vcmp.eq.s32.totalorder %v1206, %v1158
        %v1223 = vsel %vm1207, 1, 0
        %v1224 = vsel %vm1208, 1, 0
        %v1225 = vsel %vm1209, 1, 0
        %v1226 = vsel %vm1210, 1, 0
        %v1227 = vsel %vm1211, 1, 0
        %v1228 = vsel %vm1212, 1, 0
        %v1229 = vsel %vm1213, 1, 0
        %v1230 = vsel %vm1214, 1, 0
        %v1231 = vsel %vm1215, 1, 0
        %v1232 = vsel %vm1216, 1, 0
        %v1233 = vsel %vm1217, 1, 0
        %v1234 = vsel %vm1218, 1, 0
        %v1235 = vsel %vm1219, 1, 0
        %v1236 = vsel %vm1220, 1, 0
        %v1237 = vsel %vm1221, 1, 0
        %v1238 = vsel %vm1222, 1, 0
        %v1239 = vcvt.s32.f32 %v1223
        %v1240 = vcvt.s32.f32 %v1224
        %v1241 = vcvt.s32.f32 %v1225
        %v1242 = vcvt.s32.f32 %v1226
        %v1243 = vcvt.s32.f32 %v1227
        %v1244 = vcvt.s32.f32 %v1228
        %v1245 = vcvt.s32.f32 %v1229
        %v1246 = vcvt.s32.f32 %v1230
        %v1247 = vcvt.s32.f32 %v1231
        %v1248 = vcvt.s32.f32 %v1232
        %v1249 = vcvt.s32.f32 %v1233
        %v1250 = vcvt.s32.f32 %v1234
        %v1251 = vcvt.s32.f32 %v1235
        %v1252 = vcvt.s32.f32 %v1236
        %v1253 = vcvt.s32.f32 %v1237
        %v1254 = vcvt.s32.f32 %v1238
        %v1255 = vpack.c.bf16 %v1240, %v1239
        %v1256 = vpack.c.bf16 %v1242, %v1241
        %v1257 = vpack.c.bf16 %v1244, %v1243
        %v1258 = vpack.c.bf16 %v1246, %v1245
        %v1259 = vpack.c.bf16 %v1248, %v1247
        %v1260 = vpack.c.bf16 %v1250, %v1249
        %v1261 = vpack.c.bf16 %v1252, %v1251
        %v1262 = vpack.c.bf16 %v1254, %v1253
        %v1263 = vld [vmem:[#allocation2] sm:$0xff]
        %v1264 = vld [vmem:[#allocation2 + $0x8] sm:$0xff]
        %v1265 = vld [vmem:[#allocation2 + $0x10] sm:$0xff]
        %v1266 = vld [vmem:[#allocation2 + $0x18] sm:$0xff]
        %v1267 = vld [vmem:[#allocation2 + $0x20] sm:$0xff]
        %v1268 = vld [vmem:[#allocation2 + $0x28] sm:$0xff]
        %v1269 = vld [vmem:[#allocation2 + $0x30] sm:$0xff]
        %v1270 = vld [vmem:[#allocation2 + $0x38] sm:$0xff]
        %v1271 = vld [vmem:[#allocation2 + $0x40] sm:$0xff]
        %v1272 = vld [vmem:[#allocation2 + $0x48] sm:$0xff]
        %v1273 = vld [vmem:[#allocation2 + $0x50] sm:$0xff]
        %v1274 = vld [vmem:[#allocation2 + $0x58] sm:$0xff]
        %v1275 = vld [vmem:[#allocation2 + $0x60] sm:$0xff]
        %v1276 = vld [vmem:[#allocation2 + $0x68] sm:$0xff]
        %v1277 = vld [vmem:[#allocation2 + $0x70] sm:$0xff]
        %v1278 = vld [vmem:[#allocation2 + $0x78] sm:$0xff]
        %v1279 = vpack.c.bf16 %v1097, %v1094
        %v1280 = vpack.c.bf16 %v1105, %v1102
        %v1281 = vpack.c.bf16 %v1113, %v1110
        %v1282 = vpack.c.bf16 %v1121, %v1118
        %v1283 = vpack.c.bf16 %v1129, %v1126
        %v1284 = vpack.c.bf16 %v1137, %v1134
        %v1285 = vpack.c.bf16 %v1145, %v1142
        %v1286 = vpack.c.bf16 %v1153, %v1150
        %1287 = vxpose.xlu0.c.b16.start [1/8] %v1255, 128
        %1288 = vxpose.xlu0.c.b16.cont [2/8] %v1256, 128
        %1289 = vxpose.xlu0.c.b16.cont [3/8] %v1257, 128
        %1290 = vxpose.xlu0.c.b16.cont [4/8] %v1258, 128
        %1291 = vxpose.xlu0.c.b16.cont [5/8] %v1259, 128
        %1292 = vxpose.xlu0.c.b16.cont [6/8] %v1260, 128
        %1293 = vxpose.xlu0.c.b16.cont [7/8] %v1261, 128
        %1294 = vxpose.xlu0.c.b16.end [8/8] %v1262, 128
        %v1295 = vpop.trf.xlu0
        %v1296 = vpop.trf.xlu0
        %v1297 = vpop.trf.xlu0
        %v1298 = vpop.trf.xlu0
        %v1299 = vpop.trf.xlu0
        %v1300 = vpop.trf.xlu0
        %v1301 = vpop.trf.xlu0
        %v1302 = vpop.trf.xlu0
        %1303 = vmatprep.subr.bf16.mxu0 0
        %1304 = vmatpush1.bf16.msra.mxu0 %v1286
        %1305 = vmatprep.subr.bf16.mxu0 0
        %1306 = vmatpush1.bf16.msra.mxu0 %v1285
        %1307 = vmatprep.subr.bf16.mxu0 0
        %1308 = vmatpush1.bf16.msra.mxu0 %v1284
        %1309 = vmatprep.subr.bf16.mxu0 0
        %1310 = vmatpush1.bf16.msra.mxu0 %v1283
        %1311 = vmatprep.subr.bf16.mxu0 0
        %1312 = vmatpush1.bf16.msra.mxu0 %v1282
        %1313 = vmatprep.subr.bf16.mxu0 0
        %1314 = vmatpush1.bf16.msra.mxu0 %v1281
        %1315 = vmatprep.subr.bf16.mxu0 0
        %1316 = vmatpush1.bf16.msra.mxu0 %v1280
        %1317 = vmatprep.subr.bf16.mxu0 0
        %1318 = vmatpush1.bf16.msra.mxu0 %v1279
        %1319 = vmatprep.subr.bf16.mxu0 0
        %1320 = vmatpush2.bf16.msra.mxu0 0
        %1321 = vmatprep.subr.bf16.mxu0 0
        %1322 = vmatpush2.bf16.msra.mxu0 0
        %1323 = vmatprep.subr.bf16.mxu0 0
        %1324 = vmatpush2.bf16.msra.mxu0 0
        %1325 = vmatprep.subr.bf16.mxu0 0
        %1326 = vmatpush2.bf16.msra.mxu0 0
        %1327 = vmatprep.subr.bf16.mxu0 0
        %1328 = vmatpush2.bf16.msra.mxu0 0
        %1329 = vmatprep.subr.bf16.mxu0 0
        %1330 = vmatpush2.bf16.msra.mxu0 0
        %1331 = vmatprep.subr.bf16.mxu0 0
        %1332 = vmatpush2.bf16.msra.mxu0 0
        %1333 = vmatprep.subr.bf16.mxu0 0
        %1334 = vmatpush2.bf16.msra.mxu0 0
        %1335 = vmatprep.mubr.bf16.mxu0 0
        %1336 = vmatmul.mubr.bf16.gmra.mxu0 %v1295
        %v1337 = vpop.f32.mrf.mxu0
        %v1338 = vadd.f32 0.0, %v1337
        %v1339 = vpop.f32.mrf.mxu0
        %v1340 = vpop.f32.mrf.mxu0
        %v1341 = vadd.f32 0.0, %v1340
        %v1342 = vpop.f32.mrf.mxu0
        %1343 = vmatprep.mubr.bf16.mxu0 0
        %1344 = vmatmul.mubr.bf16.gmra.mxu0 %v1296
        %v1345 = vpop.f32.mrf.mxu0
        %v1346 = vadd.f32 0.0, %v1345
        %v1347 = vpop.f32.mrf.mxu0
        %v1348 = vpop.f32.mrf.mxu0
        %v1349 = vadd.f32 0.0, %v1348
        %v1350 = vpop.f32.mrf.mxu0
        %1351 = vmatprep.mubr.bf16.mxu0 0
        %1352 = vmatmul.mubr.bf16.gmra.mxu0 %v1297
        %v1353 = vpop.f32.mrf.mxu0
        %v1354 = vadd.f32 0.0, %v1353
        %v1355 = vpop.f32.mrf.mxu0
        %v1356 = vpop.f32.mrf.mxu0
        %v1357 = vadd.f32 0.0, %v1356
        %v1358 = vpop.f32.mrf.mxu0
        %1359 = vmatprep.mubr.bf16.mxu0 0
        %1360 = vmatmul.mubr.bf16.gmra.mxu0 %v1298
        %v1361 = vpop.f32.mrf.mxu0
        %v1362 = vadd.f32 0.0, %v1361
        %v1363 = vpop.f32.mrf.mxu0
        %v1364 = vpop.f32.mrf.mxu0
        %v1365 = vadd.f32 0.0, %v1364
        %v1366 = vpop.f32.mrf.mxu0
        %1367 = vmatprep.mubr.bf16.mxu0 0
        %1368 = vmatmul.mubr.bf16.gmra.mxu0 %v1299
        %v1369 = vpop.f32.mrf.mxu0
        %v1370 = vadd.f32 0.0, %v1369
        %v1371 = vpop.f32.mrf.mxu0
        %v1372 = vpop.f32.mrf.mxu0
        %v1373 = vadd.f32 0.0, %v1372
        %v1374 = vpop.f32.mrf.mxu0
        %1375 = vmatprep.mubr.bf16.mxu0 0
        %1376 = vmatmul.mubr.bf16.gmra.mxu0 %v1300
        %v1377 = vpop.f32.mrf.mxu0
        %v1378 = vadd.f32 0.0, %v1377
        %v1379 = vpop.f32.mrf.mxu0
        %v1380 = vpop.f32.mrf.mxu0
        %v1381 = vadd.f32 0.0, %v1380
        %v1382 = vpop.f32.mrf.mxu0
        %1383 = vmatprep.mubr.bf16.mxu0 0
        %1384 = vmatmul.mubr.bf16.gmra.mxu0 %v1301
        %v1385 = vpop.f32.mrf.mxu0
        %v1386 = vadd.f32 0.0, %v1385
        %v1387 = vpop.f32.mrf.mxu0
        %v1388 = vpop.f32.mrf.mxu0
        %v1389 = vadd.f32 0.0, %v1388
        %v1390 = vpop.f32.mrf.mxu0
        %1391 = vmatprep.mubr.bf16.mxu0 0
        %1392 = vmatmul.mubr.bf16.gmra.mxu0 %v1302
        %v1393 = vpop.f32.mrf.mxu0
        %v1394 = vadd.f32 0.0, %v1393
        %v1395 = vpop.f32.mrf.mxu0
        %v1396 = vpop.f32.mrf.mxu0
        %v1397 = vadd.f32 0.0, %v1396
        %v1398 = vpop.f32.mrf.mxu0
        %1399 = vdwg.mxu0
        %v1400 = vadd.f32 %v1263, %v1338
        %v1401 = vadd.f32 %v1264, %v1341
        %v1402 = vadd.f32 %v1265, %v1346
        %v1403 = vadd.f32 %v1266, %v1349
        %v1404 = vadd.f32 %v1267, %v1354
        %v1405 = vadd.f32 %v1268, %v1357
        %v1406 = vadd.f32 %v1269, %v1362
        %v1407 = vadd.f32 %v1270, %v1365
        %v1408 = vadd.f32 %v1271, %v1370
        %v1409 = vadd.f32 %v1272, %v1373
        %v1410 = vadd.f32 %v1273, %v1378
        %v1411 = vadd.f32 %v1274, %v1381
        %v1412 = vadd.f32 %v1275, %v1386
        %v1413 = vadd.f32 %v1276, %v1389
        %v1414 = vadd.f32 %v1277, %v1394
        %v1415 = vadd.f32 %v1278, %v1397
        %1416 = vst [vmem:[#allocation2] sm:$0xff] %v1400
        %1417 = vst [vmem:[#allocation2 + $0x8] sm:$0xff] %v1401
        %1418 = vst [vmem:[#allocation2 + $0x10] sm:$0xff] %v1402
        %1419 = vst [vmem:[#allocation2 + $0x18] sm:$0xff] %v1403
        %1420 = vst [vmem:[#allocation2 + $0x20] sm:$0xff] %v1404
        %1421 = vst [vmem:[#allocation2 + $0x28] sm:$0xff] %v1405
        %1422 = vst [vmem:[#allocation2 + $0x30] sm:$0xff] %v1406
        %1423 = vst [vmem:[#allocation2 + $0x38] sm:$0xff] %v1407
        %1424 = vst [vmem:[#allocation2 + $0x40] sm:$0xff] %v1408
        %1425 = vst [vmem:[#allocation2 + $0x48] sm:$0xff] %v1409
        %1426 = vst [vmem:[#allocation2 + $0x50] sm:$0xff] %v1410
        %1427 = vst [vmem:[#allocation2 + $0x58] sm:$0xff] %v1411
        %1428 = vst [vmem:[#allocation2 + $0x60] sm:$0xff] %v1412
        %1429 = vst [vmem:[#allocation2 + $0x68] sm:$0xff] %v1413
        %1430 = vst [vmem:[#allocation2 + $0x70] sm:$0xff] %v1414
        %1431 = vst [vmem:[#allocation2 + $0x78] sm:$0xff] %v1415
        %p1432 = scmp.eq.s32.totalorder %s28, 3
        // Predicated region
        $region61: #{tpu_custom_call.1} parent=55 // pred_check
          %p1433 = pneg %p1432
        $region62: #{tpu_custom_call.1} parent=55 // pred_check_branch
          %1435 = sbr.rel (%p1433) target = $region64
        $region63: #{tpu_custom_call.1} parent=55 // pred_region
          %v1436 = vld [vmem:[#allocation2] sm:$0xff]
          %v1437 = vld [vmem:[#allocation2 + $0x8] sm:$0xff]
          %v1438 = vld [vmem:[#allocation2 + $0x10] sm:$0xff]
          %v1439 = vld [vmem:[#allocation2 + $0x18] sm:$0xff]
          %v1440 = vld [vmem:[#allocation2 + $0x20] sm:$0xff]
          %v1441 = vld [vmem:[#allocation2 + $0x28] sm:$0xff]
          %v1442 = vld [vmem:[#allocation2 + $0x30] sm:$0xff]
          %v1443 = vld [vmem:[#allocation2 + $0x38] sm:$0xff]
          %v1444 = vld [vmem:[#allocation2 + $0x40] sm:$0xff]
          %v1445 = vld [vmem:[#allocation2 + $0x48] sm:$0xff]
          %v1446 = vld [vmem:[#allocation2 + $0x50] sm:$0xff]
          %v1447 = vld [vmem:[#allocation2 + $0x58] sm:$0xff]
          %v1448 = vld [vmem:[#allocation2 + $0x60] sm:$0xff]
          %v1449 = vld [vmem:[#allocation2 + $0x68] sm:$0xff]
          %v1450 = vld [vmem:[#allocation2 + $0x70] sm:$0xff]
          %v1451 = vld [vmem:[#allocation2 + $0x78] sm:$0xff]
          %v1452 = vld [vmem:[%s6] sm:$0xff]
          %v1453 = vld [vmem:[%s6 + $0x8] sm:$0xff]
          %v1454 = vld [vmem:[%s6 + $0x10] sm:$0xff]
          %v1455 = vld [vmem:[%s6 + $0x18] sm:$0xff]
          %v1456 = vld [vmem:[%s6 + $0x20] sm:$0xff]
          %v1457 = vld [vmem:[%s6 + $0x28] sm:$0xff]
          %v1458 = vld [vmem:[%s6 + $0x30] sm:$0xff]
          %v1459 = vld [vmem:[%s6 + $0x38] sm:$0xff]
          %v1460 = vld [vmem:[%s6 + $0x40] sm:$0xff]
          %v1461 = vld [vmem:[%s6 + $0x48] sm:$0xff]
          %v1462 = vld [vmem:[%s6 + $0x50] sm:$0xff]
          %v1463 = vld [vmem:[%s6 + $0x58] sm:$0xff]
          %v1464 = vld [vmem:[%s6 + $0x60] sm:$0xff]
          %v1465 = vld [vmem:[%s6 + $0x68] sm:$0xff]
          %v1466 = vld [vmem:[%s6 + $0x70] sm:$0xff]
          %v1467 = vld [vmem:[%s6 + $0x78] sm:$0xff]
          %1468 = vmatprep.subr.mxu0 0.0
          %1469 = vmatpush1.msra.mxu0 %v1467
          %1470 = vmatprep.subr.mxu0 0.0
          %1471 = vmatpush1.msra.mxu0 %v1466
          %1472 = vmatprep.subr.mxu0 0.0
          %1473 = vmatpush1.msra.mxu0 %v1465
          %1474 = vmatprep.subr.mxu0 0.0
          %1475 = vmatpush1.msra.mxu0 %v1464
          %1476 = vmatprep.subr.mxu0 0.0
          %1477 = vmatpush1.msra.mxu0 %v1463
          %1478 = vmatprep.subr.mxu0 0.0
          %1479 = vmatpush1.msra.mxu0 %v1462
          %1480 = vmatprep.subr.mxu0 0.0
          %1481 = vmatpush1.msra.mxu0 %v1461
          %1482 = vmatprep.subr.mxu0 0.0
          %1483 = vmatpush1.msra.mxu0 %v1460
          %1484 = vmatprep.subr.mxu0 0.0
          %1485 = vmatpush1.msra.mxu0 %v1459
          %1486 = vmatprep.subr.mxu0 0.0
          %1487 = vmatpush1.msra.mxu0 %v1458
          %1488 = vmatprep.subr.mxu0 0.0
          %1489 = vmatpush1.msra.mxu0 %v1457
          %1490 = vmatprep.subr.mxu0 0.0
          %1491 = vmatpush1.msra.mxu0 %v1456
          %1492 = vmatprep.subr.mxu0 0.0
          %1493 = vmatpush1.msra.mxu0 %v1455
          %1494 = vmatprep.subr.mxu0 0.0
          %1495 = vmatpush1.msra.mxu0 %v1454
          %1496 = vmatprep.subr.mxu0 0.0
          %1497 = vmatpush1.msra.mxu0 %v1453
          %1498 = vmatprep.subr.mxu0 0.0
          %1499 = vmatpush1.msra.mxu0 %v1452
          %1500 = vmatprep.subr.mxu0 0.0
          %1501 = vmatpush2.msra.mxu0 0.0
          %1502 = vmatprep.subr.mxu0 0.0
          %1503 = vmatpush2.msra.mxu0 0.0
          %1504 = vmatprep.subr.mxu0 0.0
          %1505 = vmatpush2.msra.mxu0 0.0
          %1506 = vmatprep.subr.mxu0 0.0
          %1507 = vmatpush2.msra.mxu0 0.0
          %1508 = vmatprep.subr.mxu0 0.0
          %1509 = vmatpush2.msra.mxu0 0.0
          %1510 = vmatprep.subr.mxu0 0.0
          %1511 = vmatpush2.msra.mxu0 0.0
          %1512 = vmatprep.subr.mxu0 0.0
          %1513 = vmatpush2.msra.mxu0 0.0
          %1514 = vmatprep.subr.mxu0 0.0
          %1515 = vmatpush2.msra.mxu0 0.0
          %1516 = vmatprep.subr.mxu0 0.0
          %1517 = vmatpush2.msra.mxu0 0.0
          %1518 = vmatprep.subr.mxu0 0.0
          %1519 = vmatpush2.msra.mxu0 0.0
          %1520 = vmatprep.subr.mxu0 0.0
          %1521 = vmatpush2.msra.mxu0 0.0
          %1522 = vmatprep.subr.mxu0 0.0
          %1523 = vmatpush2.msra.mxu0 0.0
          %1524 = vmatprep.subr.mxu0 0.0
          %1525 = vmatpush2.msra.mxu0 0.0
          %1526 = vmatprep.subr.mxu0 0.0
          %1527 = vmatpush2.msra.mxu0 0.0
          %1528 = vmatprep.subr.mxu0 0.0
          %1529 = vmatpush2.msra.mxu0 0.0
          %1530 = vmatprep.subr.mxu0 0.0
          %1531 = vmatpush2.msra.mxu0 0.0
          %1532 = vmatprep.mubr.f32.mxu0 0.0
          %1533 = vmatmul.mubr.f32.gmra.mxu0 %v1436
          %v1534 = vpop.f32.mrf.mxu0
          %v1535 = vadd.f32 0.0, %v1534
          %v1536 = vpop.f32.mrf.mxu0
          %1537 = vmatprep.mubr.f32.mxu0 0.0
          %1538 = vmatmul.mubr.f32.gmra.mxu0 %v1437
          %v1539 = vpop.f32.mrf.mxu0
          %v1540 = vadd.f32 0.0, %v1539
          %v1541 = vpop.f32.mrf.mxu0
          %1542 = vmatprep.mubr.f32.mxu0 0.0
          %1543 = vmatmul.mubr.f32.gmra.mxu0 %v1438
          %v1544 = vpop.f32.mrf.mxu0
          %v1545 = vadd.f32 0.0, %v1544
          %v1546 = vpop.f32.mrf.mxu0
          %1547 = vmatprep.mubr.f32.mxu0 0.0
          %1548 = vmatmul.mubr.f32.gmra.mxu0 %v1439
          %v1549 = vpop.f32.mrf.mxu0
          %v1550 = vadd.f32 0.0, %v1549
          %v1551 = vpop.f32.mrf.mxu0
          %1552 = vmatprep.mubr.f32.mxu0 0.0
          %1553 = vmatmul.mubr.f32.gmra.mxu0 %v1440
          %v1554 = vpop.f32.mrf.mxu0
          %v1555 = vadd.f32 0.0, %v1554
          %v1556 = vpop.f32.mrf.mxu0
          %1557 = vmatprep.mubr.f32.mxu0 0.0
          %1558 = vmatmul.mubr.f32.gmra.mxu0 %v1441
          %v1559 = vpop.f32.mrf.mxu0
          %v1560 = vadd.f32 0.0, %v1559
          %v1561 = vpop.f32.mrf.mxu0
          %1562 = vmatprep.mubr.f32.mxu0 0.0
          %1563 = vmatmul.mubr.f32.gmra.mxu0 %v1442
          %v1564 = vpop.f32.mrf.mxu0
          %v1565 = vadd.f32 0.0, %v1564
          %v1566 = vpop.f32.mrf.mxu0
          %1567 = vmatprep.mubr.f32.mxu0 0.0
          %1568 = vmatmul.mubr.f32.gmra.mxu0 %v1443
          %v1569 = vpop.f32.mrf.mxu0
          %v1570 = vadd.f32 0.0, %v1569
          %v1571 = vpop.f32.mrf.mxu0
          %1572 = vmatprep.mubr.f32.mxu0 0.0
          %1573 = vmatmul.mubr.f32.gmra.mxu0 %v1444
          %v1574 = vpop.f32.mrf.mxu0
          %v1575 = vadd.f32 0.0, %v1574
          %v1576 = vpop.f32.mrf.mxu0
          %1577 = vmatprep.mubr.f32.mxu0 0.0
          %1578 = vmatmul.mubr.f32.gmra.mxu0 %v1445
          %v1579 = vpop.f32.mrf.mxu0
          %v1580 = vadd.f32 0.0, %v1579
          %v1581 = vpop.f32.mrf.mxu0
          %1582 = vmatprep.mubr.f32.mxu0 0.0
          %1583 = vmatmul.mubr.f32.gmra.mxu0 %v1446
          %v1584 = vpop.f32.mrf.mxu0
          %v1585 = vadd.f32 0.0, %v1584
          %v1586 = vpop.f32.mrf.mxu0
          %1587 = vmatprep.mubr.f32.mxu0 0.0
          %1588 = vmatmul.mubr.f32.gmra.mxu0 %v1447
          %v1589 = vpop.f32.mrf.mxu0
          %v1590 = vadd.f32 0.0, %v1589
          %v1591 = vpop.f32.mrf.mxu0
          %1592 = vmatprep.mubr.f32.mxu0 0.0
          %1593 = vmatmul.mubr.f32.gmra.mxu0 %v1448
          %v1594 = vpop.f32.mrf.mxu0
          %v1595 = vadd.f32 0.0, %v1594
          %v1596 = vpop.f32.mrf.mxu0
          %1597 = vmatprep.mubr.f32.mxu0 0.0
          %1598 = vmatmul.mubr.f32.gmra.mxu0 %v1449
          %v1599 = vpop.f32.mrf.mxu0
          %v1600 = vadd.f32 0.0, %v1599
          %v1601 = vpop.f32.mrf.mxu0
          %1602 = vmatprep.mubr.f32.mxu0 0.0
          %1603 = vmatmul.mubr.f32.gmra.mxu0 %v1450
          %v1604 = vpop.f32.mrf.mxu0
          %v1605 = vadd.f32 0.0, %v1604
          %v1606 = vpop.f32.mrf.mxu0
          %1607 = vmatprep.mubr.f32.mxu0 0.0
          %1608 = vmatmul.mubr.f32.gmra.mxu0 %v1451
          %v1609 = vpop.f32.mrf.mxu0
          %v1610 = vadd.f32 0.0, %v1609
          %v1611 = vpop.f32.mrf.mxu0
          %1612 = vdwg.mxu0
          %v1613 = vld [vmem:[%s425] sm:$0xff]
          %v1614 = vld [vmem:[%s425 + $0x8] sm:$0xff]
          %v1615 = vld [vmem:[%s425 + $0x10] sm:$0xff]
          %v1616 = vld [vmem:[%s425 + $0x18] sm:$0xff]
          %v1617 = vld [vmem:[%s425 + $0x20] sm:$0xff]
          %v1618 = vld [vmem:[%s425 + $0x28] sm:$0xff]
          %v1619 = vld [vmem:[%s425 + $0x30] sm:$0xff]
          %v1620 = vld [vmem:[%s425 + $0x38] sm:$0xff]
          %v1621 = vld [vmem:[%s425 + $0x40] sm:$0xff]
          %v1622 = vld [vmem:[%s425 + $0x48] sm:$0xff]
          %v1623 = vld [vmem:[%s425 + $0x50] sm:$0xff]
          %v1624 = vld [vmem:[%s425 + $0x58] sm:$0xff]
          %v1625 = vld [vmem:[%s425 + $0x60] sm:$0xff]
          %v1626 = vld [vmem:[%s425 + $0x68] sm:$0xff]
          %v1627 = vld [vmem:[%s425 + $0x70] sm:$0xff]
          %v1628 = vld [vmem:[%s425 + $0x78] sm:$0xff]
          %1630 = vset.pattern.permute.xlu0 0
          %1631 = vperm.xlu0 %1630, %v1613
          %v1632 = vpop.permute.xlu0 %1631
          %1635 = vset.pattern.permute.xlu0 0
          %1636 = vperm.xlu0 %1635, %v1614
          %v1637 = vpop.permute.xlu0 %1636
          %1640 = vset.pattern.permute.xlu0 0
          %1641 = vperm.xlu0 %1640, %v1615
          %v1642 = vpop.permute.xlu0 %1641
          %1645 = vset.pattern.permute.xlu0 0
          %1646 = vperm.xlu0 %1645, %v1616
          %v1647 = vpop.permute.xlu0 %1646
          %1650 = vset.pattern.permute.xlu0 0
          %1651 = vperm.xlu0 %1650, %v1617
          %v1652 = vpop.permute.xlu0 %1651
          %1655 = vset.pattern.permute.xlu0 0
          %1656 = vperm.xlu0 %1655, %v1618
          %v1657 = vpop.permute.xlu0 %1656
          %1660 = vset.pattern.permute.xlu0 0
          %1661 = vperm.xlu0 %1660, %v1619
          %v1662 = vpop.permute.xlu0 %1661
          %1665 = vset.pattern.permute.xlu0 0
          %1666 = vperm.xlu0 %1665, %v1620
          %v1667 = vpop.permute.xlu0 %1666
          %1670 = vset.pattern.permute.xlu0 0
          %1671 = vperm.xlu0 %1670, %v1621
          %v1672 = vpop.permute.xlu0 %1671
          %1675 = vset.pattern.permute.xlu0 0
          %1676 = vperm.xlu0 %1675, %v1622
          %v1677 = vpop.permute.xlu0 %1676
          %1680 = vset.pattern.permute.xlu0 0
          %1681 = vperm.xlu0 %1680, %v1623
          %v1682 = vpop.permute.xlu0 %1681
          %1685 = vset.pattern.permute.xlu0 0
          %1686 = vperm.xlu0 %1685, %v1624
          %v1687 = vpop.permute.xlu0 %1686
          %1690 = vset.pattern.permute.xlu0 0
          %1691 = vperm.xlu0 %1690, %v1625
          %v1692 = vpop.permute.xlu0 %1691
          %1695 = vset.pattern.permute.xlu0 0
          %1696 = vperm.xlu0 %1695, %v1626
          %v1697 = vpop.permute.xlu0 %1696
          %1700 = vset.pattern.permute.xlu0 0
          %1701 = vperm.xlu0 %1700, %v1627
          %v1702 = vpop.permute.xlu0 %1701
          %1705 = vset.pattern.permute.xlu0 0
          %1706 = vperm.xlu0 %1705, %v1628
          %v1707 = vpop.permute.xlu0 %1706
          %v1709 = vmul.f32 %v1535, %v1632
          %v1710 = vmul.f32 %v1540, %v1637
          %v1711 = vmul.f32 %v1545, %v1642
          %v1712 = vmul.f32 %v1550, %v1647
          %v1713 = vmul.f32 %v1555, %v1652
          %v1714 = vmul.f32 %v1560, %v1657
          %v1715 = vmul.f32 %v1565, %v1662
          %v1716 = vmul.f32 %v1570, %v1667
          %v1717 = vmul.f32 %v1575, %v1672
          %v1718 = vmul.f32 %v1580, %v1677
          %v1719 = vmul.f32 %v1585, %v1682
          %v1720 = vmul.f32 %v1590, %v1687
          %v1721 = vmul.f32 %v1595, %v1692
          %v1722 = vmul.f32 %v1600, %v1697
          %v1723 = vmul.f32 %v1605, %v1702
          %v1724 = vmul.f32 %v1610, %v1707
          %v1725 = vld [vmem:[%s431] sm:$0xff]
          %v1726 = vld [vmem:[%s431 + $0x8] sm:$0xff]
          %v1727 = vld [vmem:[%s431 + $0x10] sm:$0xff]
          %v1728 = vld [vmem:[%s431 + $0x18] sm:$0xff]
          %v1729 = vld [vmem:[%s431 + $0x20] sm:$0xff]
          %v1730 = vld [vmem:[%s431 + $0x28] sm:$0xff]
          %v1731 = vld [vmem:[%s431 + $0x30] sm:$0xff]
          %v1732 = vld [vmem:[%s431 + $0x38] sm:$0xff]
          %v1733 = vld [vmem:[%s431 + $0x40] sm:$0xff]
          %v1734 = vld [vmem:[%s431 + $0x48] sm:$0xff]
          %v1735 = vld [vmem:[%s431 + $0x50] sm:$0xff]
          %v1736 = vld [vmem:[%s431 + $0x58] sm:$0xff]
          %v1737 = vld [vmem:[%s431 + $0x60] sm:$0xff]
          %v1738 = vld [vmem:[%s431 + $0x68] sm:$0xff]
          %v1739 = vld [vmem:[%s431 + $0x70] sm:$0xff]
          %v1740 = vld [vmem:[%s431 + $0x78] sm:$0xff]
          %v1741 = vld [vmem:[%s8] sm:$0xff]
          %v1742 = vld [vmem:[%s8 + $0x8] sm:$0xff]
          %v1743 = vld [vmem:[%s8 + $0x10] sm:$0xff]
          %v1744 = vld [vmem:[%s8 + $0x18] sm:$0xff]
          %v1745 = vld [vmem:[%s8 + $0x20] sm:$0xff]
          %v1746 = vld [vmem:[%s8 + $0x28] sm:$0xff]
          %v1747 = vld [vmem:[%s8 + $0x30] sm:$0xff]
          %v1748 = vld [vmem:[%s8 + $0x38] sm:$0xff]
          %v1749 = vld [vmem:[%s8 + $0x40] sm:$0xff]
          %v1750 = vld [vmem:[%s8 + $0x48] sm:$0xff]
          %v1751 = vld [vmem:[%s8 + $0x50] sm:$0xff]
          %v1752 = vld [vmem:[%s8 + $0x58] sm:$0xff]
          %v1753 = vld [vmem:[%s8 + $0x60] sm:$0xff]
          %v1754 = vld [vmem:[%s8 + $0x68] sm:$0xff]
          %v1755 = vld [vmem:[%s8 + $0x70] sm:$0xff]
          %v1756 = vld [vmem:[%s8 + $0x78] sm:$0xff]
          %1757 = vmatprep.subr.mxu0 0.0
          %1758 = vmatpush1.msra.mxu0 %v1756
          %1759 = vmatprep.subr.mxu0 0.0
          %1760 = vmatpush1.msra.mxu0 %v1755
          %1761 = vmatprep.subr.mxu0 0.0
          %1762 = vmatpush1.msra.mxu0 %v1754
          %1763 = vmatprep.subr.mxu0 0.0
          %1764 = vmatpush1.msra.mxu0 %v1753
          %1765 = vmatprep.subr.mxu0 0.0
          %1766 = vmatpush1.msra.mxu0 %v1752
          %1767 = vmatprep.subr.mxu0 0.0
          %1768 = vmatpush1.msra.mxu0 %v1751
          %1769 = vmatprep.subr.mxu0 0.0
          %1770 = vmatpush1.msra.mxu0 %v1750
          %1771 = vmatprep.subr.mxu0 0.0
          %1772 = vmatpush1.msra.mxu0 %v1749
          %1773 = vmatprep.subr.mxu0 0.0
          %1774 = vmatpush1.msra.mxu0 %v1748
          %1775 = vmatprep.subr.mxu0 0.0
          %1776 = vmatpush1.msra.mxu0 %v1747
          %1777 = vmatprep.subr.mxu0 0.0
          %1778 = vmatpush1.msra.mxu0 %v1746
          %1779 = vmatprep.subr.mxu0 0.0
          %1780 = vmatpush1.msra.mxu0 %v1745
          %1781 = vmatprep.subr.mxu0 0.0
          %1782 = vmatpush1.msra.mxu0 %v1744
          %1783 = vmatprep.subr.mxu0 0.0
          %1784 = vmatpush1.msra.mxu0 %v1743
          %1785 = vmatprep.subr.mxu0 0.0
          %1786 = vmatpush1.msra.mxu0 %v1742
          %1787 = vmatprep.subr.mxu0 0.0
          %1788 = vmatpush1.msra.mxu0 %v1741
          %1789 = vmatprep.subr.mxu0 0.0
          %1790 = vmatpush2.msra.mxu0 0.0
          %1791 = vmatprep.subr.mxu0 0.0
          %1792 = vmatpush2.msra.mxu0 0.0
          %1793 = vmatprep.subr.mxu0 0.0
          %1794 = vmatpush2.msra.mxu0 0.0
          %1795 = vmatprep.subr.mxu0 0.0
          %1796 = vmatpush2.msra.mxu0 0.0
          %1797 = vmatprep.subr.mxu0 0.0
          %1798 = vmatpush2.msra.mxu0 0.0
          %1799 = vmatprep.subr.mxu0 0.0
          %1800 = vmatpush2.msra.mxu0 0.0
          %1801 = vmatprep.subr.mxu0 0.0
          %1802 = vmatpush2.msra.mxu0 0.0
          %1803 = vmatprep.subr.mxu0 0.0
          %1804 = vmatpush2.msra.mxu0 0.0
          %1805 = vmatprep.subr.mxu0 0.0
          %1806 = vmatpush2.msra.mxu0 0.0
          %1807 = vmatprep.subr.mxu0 0.0
          %1808 = vmatpush2.msra.mxu0 0.0
          %1809 = vmatprep.subr.mxu0 0.0
          %1810 = vmatpush2.msra.mxu0 0.0
          %1811 = vmatprep.subr.mxu0 0.0
          %1812 = vmatpush2.msra.mxu0 0.0
          %1813 = vmatprep.subr.mxu0 0.0
          %1814 = vmatpush2.msra.mxu0 0.0
          %1815 = vmatprep.subr.mxu0 0.0
          %1816 = vmatpush2.msra.mxu0 0.0
          %1817 = vmatprep.subr.mxu0 0.0
          %1818 = vmatpush2.msra.mxu0 0.0
          %1819 = vmatprep.subr.mxu0 0.0
          %1820 = vmatpush2.msra.mxu0 0.0
          %1821 = vmatprep.mubr.f32.mxu0 0.0
          %1822 = vmatmul.mubr.f32.gmra.mxu0 %v1725
          %v1823 = vpop.f32.mrf.mxu0
          %v1824 = vadd.f32 0.0, %v1823
          %v1825 = vpop.f32.mrf.mxu0
          %1826 = vmatprep.mubr.f32.mxu0 0.0
          %1827 = vmatmul.mubr.f32.gmra.mxu0 %v1726
          %v1828 = vpop.f32.mrf.mxu0
          %v1829 = vadd.f32 0.0, %v1828
          %v1830 = vpop.f32.mrf.mxu0
          %1831 = vmatprep.mubr.f32.mxu0 0.0
          %1832 = vmatmul.mubr.f32.gmra.mxu0 %v1727
          %v1833 = vpop.f32.mrf.mxu0
          %v1834 = vadd.f32 0.0, %v1833
          %v1835 = vpop.f32.mrf.mxu0
          %1836 = vmatprep.mubr.f32.mxu0 0.0
          %1837 = vmatmul.mubr.f32.gmra.mxu0 %v1728
          %v1838 = vpop.f32.mrf.mxu0
          %v1839 = vadd.f32 0.0, %v1838
          %v1840 = vpop.f32.mrf.mxu0
          %1841 = vmatprep.mubr.f32.mxu0 0.0
          %1842 = vmatmul.mubr.f32.gmra.mxu0 %v1729
          %v1843 = vpop.f32.mrf.mxu0
          %v1844 = vadd.f32 0.0, %v1843
          %v1845 = vpop.f32.mrf.mxu0
          %1846 = vmatprep.mubr.f32.mxu0 0.0
          %1847 = vmatmul.mubr.f32.gmra.mxu0 %v1730
          %v1848 = vpop.f32.mrf.mxu0
          %v1849 = vadd.f32 0.0, %v1848
          %v1850 = vpop.f32.mrf.mxu0
          %1851 = vmatprep.mubr.f32.mxu0 0.0
          %1852 = vmatmul.mubr.f32.gmra.mxu0 %v1731
          %v1853 = vpop.f32.mrf.mxu0
          %v1854 = vadd.f32 0.0, %v1853
          %v1855 = vpop.f32.mrf.mxu0
          %1856 = vmatprep.mubr.f32.mxu0 0.0
          %1857 = vmatmul.mubr.f32.gmra.mxu0 %v1732
          %v1858 = vpop.f32.mrf.mxu0
          %v1859 = vadd.f32 0.0, %v1858
          %v1860 = vpop.f32.mrf.mxu0
          %1861 = vmatprep.mubr.f32.mxu0 0.0
          %1862 = vmatmul.mubr.f32.gmra.mxu0 %v1733
          %v1863 = vpop.f32.mrf.mxu0
          %v1864 = vadd.f32 0.0, %v1863
          %v1865 = vpop.f32.mrf.mxu0
          %1866 = vmatprep.mubr.f32.mxu0 0.0
          %1867 = vmatmul.mubr.f32.gmra.mxu0 %v1734
          %v1868 = vpop.f32.mrf.mxu0
          %v1869 = vadd.f32 0.0, %v1868
          %v1870 = vpop.f32.mrf.mxu0
          %1871 = vmatprep.mubr.f32.mxu0 0.0
          %1872 = vmatmul.mubr.f32.gmra.mxu0 %v1735
          %v1873 = vpop.f32.mrf.mxu0
          %v1874 = vadd.f32 0.0, %v1873
          %v1875 = vpop.f32.mrf.mxu0
          %1876 = vmatprep.mubr.f32.mxu0 0.0
          %1877 = vmatmul.mubr.f32.gmra.mxu0 %v1736
          %v1878 = vpop.f32.mrf.mxu0
          %v1879 = vadd.f32 0.0, %v1878
          %v1880 = vpop.f32.mrf.mxu0
          %1881 = vmatprep.mubr.f32.mxu0 0.0
          %1882 = vmatmul.mubr.f32.gmra.mxu0 %v1737
          %v1883 = vpop.f32.mrf.mxu0
          %v1884 = vadd.f32 0.0, %v1883
          %v1885 = vpop.f32.mrf.mxu0
          %1886 = vmatprep.mubr.f32.mxu0 0.0
          %1887 = vmatmul.mubr.f32.gmra.mxu0 %v1738
          %v1888 = vpop.f32.mrf.mxu0
          %v1889 = vadd.f32 0.0, %v1888
          %v1890 = vpop.f32.mrf.mxu0
          %1891 = vmatprep.mubr.f32.mxu0 0.0
          %1892 = vmatmul.mubr.f32.gmra.mxu0 %v1739
          %v1893 = vpop.f32.mrf.mxu0
          %v1894 = vadd.f32 0.0, %v1893
          %v1895 = vpop.f32.mrf.mxu0
          %1896 = vmatprep.mubr.f32.mxu0 0.0
          %1897 = vmatmul.mubr.f32.gmra.mxu0 %v1740
          %v1898 = vpop.f32.mrf.mxu0
          %v1899 = vadd.f32 0.0, %v1898
          %v1900 = vpop.f32.mrf.mxu0
          %1901 = vdwg.mxu0
          %v1902 = vadd.f32 %v1709, %v1824
          %v1903 = vadd.f32 %v1710, %v1829
          %v1904 = vadd.f32 %v1711, %v1834
          %v1905 = vadd.f32 %v1712, %v1839
          %v1906 = vadd.f32 %v1713, %v1844
          %v1907 = vadd.f32 %v1714, %v1849
          %v1908 = vadd.f32 %v1715, %v1854
          %v1909 = vadd.f32 %v1716, %v1859
          %v1910 = vadd.f32 %v1717, %v1864
          %v1911 = vadd.f32 %v1718, %v1869
          %v1912 = vadd.f32 %v1719, %v1874
          %v1913 = vadd.f32 %v1720, %v1879
          %v1914 = vadd.f32 %v1721, %v1884
          %v1915 = vadd.f32 %v1722, %v1889
          %v1916 = vadd.f32 %v1723, %v1894
          %v1917 = vadd.f32 %v1724, %v1899
          %vm1918 = vcmp.ge.f32.partialorder %v1902, 0.0
          %vm1919 = vcmp.ge.f32.partialorder %v1903, 0.0
          %vm1920 = vcmp.ge.f32.partialorder %v1904, 0.0
          %vm1921 = vcmp.ge.f32.partialorder %v1905, 0.0
          %vm1922 = vcmp.ge.f32.partialorder %v1906, 0.0
          %vm1923 = vcmp.ge.f32.partialorder %v1907, 0.0
          %vm1924 = vcmp.ge.f32.partialorder %v1908, 0.0
          %vm1925 = vcmp.ge.f32.partialorder %v1909, 0.0
          %vm1926 = vcmp.ge.f32.partialorder %v1910, 0.0
          %vm1927 = vcmp.ge.f32.partialorder %v1911, 0.0
          %vm1928 = vcmp.ge.f32.partialorder %v1912, 0.0
          %vm1929 = vcmp.ge.f32.partialorder %v1913, 0.0
          %vm1930 = vcmp.ge.f32.partialorder %v1914, 0.0
          %vm1931 = vcmp.ge.f32.partialorder %v1915, 0.0
          %vm1932 = vcmp.ge.f32.partialorder %v1916, 0.0
          %vm1933 = vcmp.ge.f32.partialorder %v1917, 0.0
          %v1934 = vmul.f32 %v1902, 0.22916667
          %v1935 = vmul.f32 %v1903, 0.22916667
          %v1936 = vmul.f32 %v1904, 0.22916667
          %v1937 = vmul.f32 %v1905, 0.22916667
          %v1938 = vmul.f32 %v1906, 0.22916667
          %v1939 = vmul.f32 %v1907, 0.22916667
          %v1940 = vmul.f32 %v1908, 0.22916667
          %v1941 = vmul.f32 %v1909, 0.22916667
          %v1942 = vmul.f32 %v1910, 0.22916667
          %v1943 = vmul.f32 %v1911, 0.22916667
          %v1944 = vmul.f32 %v1912, 0.22916667
          %v1945 = vmul.f32 %v1913, 0.22916667
          %v1946 = vmul.f32 %v1914, 0.22916667
          %v1947 = vmul.f32 %v1915, 0.22916667
          %v1948 = vmul.f32 %v1916, 0.22916667
          %v1949 = vmul.f32 %v1917, 0.22916667
          %v1950 = vsel %vm1918, %v1902, %v1934
          %v1951 = vsel %vm1919, %v1903, %v1935
          %v1952 = vsel %vm1920, %v1904, %v1936
          %v1953 = vsel %vm1921, %v1905, %v1937
          %v1954 = vsel %vm1922, %v1906, %v1938
          %v1955 = vsel %vm1923, %v1907, %v1939
          %v1956 = vsel %vm1924, %v1908, %v1940
          %v1957 = vsel %vm1925, %v1909, %v1941
          %v1958 = vsel %vm1926, %v1910, %v1942
          %v1959 = vsel %vm1927, %v1911, %v1943
          %v1960 = vsel %vm1928, %v1912, %v1944
          %v1961 = vsel %vm1929, %v1913, %v1945
          %v1962 = vsel %vm1930, %v1914, %v1946
          %v1963 = vsel %vm1931, %v1915, %v1947
          %v1964 = vsel %vm1932, %v1916, %v1948
          %v1965 = vsel %vm1933, %v1917, %v1949
          %1966 = vst [vmem:[%s402] sm:$0xff] %v1950
          %1967 = vst [vmem:[%s402 + $0x8] sm:$0xff] %v1951
          %1968 = vst [vmem:[%s402 + $0x10] sm:$0xff] %v1952
          %1969 = vst [vmem:[%s402 + $0x18] sm:$0xff] %v1953
          %1970 = vst [vmem:[%s402 + $0x20] sm:$0xff] %v1954
          %1971 = vst [vmem:[%s402 + $0x28] sm:$0xff] %v1955
          %1972 = vst [vmem:[%s402 + $0x30] sm:$0xff] %v1956
          %1973 = vst [vmem:[%s402 + $0x38] sm:$0xff] %v1957
          %1974 = vst [vmem:[%s402 + $0x40] sm:$0xff] %v1958
          %1975 = vst [vmem:[%s402 + $0x48] sm:$0xff] %v1959
          %1976 = vst [vmem:[%s402 + $0x50] sm:$0xff] %v1960
          %1977 = vst [vmem:[%s402 + $0x58] sm:$0xff] %v1961
          %1978 = vst [vmem:[%s402 + $0x60] sm:$0xff] %v1962
          %1979 = vst [vmem:[%s402 + $0x68] sm:$0xff] %v1963
          %1980 = vst [vmem:[%s402 + $0x70] sm:$0xff] %v1964
          %1981 = vst [vmem:[%s402 + $0x78] sm:$0xff] %v1965
        $region64: #{tpu_custom_call.1} parent=55 // pred_fallthru
          _
        %s1982 = sand.u32 %s257, 1
        %s1983 = scalar_lea.sflag [#allocation4], %s1982
        %s1984 = sand.u32 %s257, 1
        %s1985 = smul.addr %s1984, 128
        %s1986 = scalar_lea.vmem [#allocation3], %s1985
        // Predicated region
        $region65: #{tpu_custom_call.1} parent=55 // pred_check
          %p1987 = pneg %p267
        $region66: #{tpu_custom_call.1} parent=55 // pred_check_branch
          %1989 = sbr.rel (%p1987) target = $region68
        $region67: #{tpu_custom_call.1} parent=55 // pred_region
          %s1990 = smul.u32 16, %s27
          %s1992 = ssub.s32 2048, 2048
          %1993 = vsyncadd %s1983, %s1992
          %s1994 = smul.addr %s1990, 128
          %s1995 = scalar_lea.hbm %s9, %s1994
          %s1996 = sshll.u32 %s1986, 4
          %s1997 = int_to_ptr.vmem [resolvable:$true] %s1996
          %2002 = dma.vmem_to_hbm [thread:$0]  %s1997, 2048, %s1995, %s1983, 128, 128, 8
        $region68: #{tpu_custom_call.1} parent=55 // pred_fallthru
          _
      $region56: #{tpu_custom_call.1} parent=5 // pred_fallthru
        _
      %p2003 = scmp.le.s32.totalorder 2, %s18
      // Predicated region
      $region69: #{tpu_custom_call.1} parent=5 // pred_check
        %p2004 = pneg %p2003
      $region70: #{tpu_custom_call.1} parent=5 // pred_check_branch
        %2006 = sbr.rel (%p2004) target = $region72
      $region71: #{tpu_custom_call.1} parent=5 // pred_region
        %s2007 = ssub.s32 %s18, 2
        // Predicated region
        $region73: #{tpu_custom_call.1} parent=71 // pred_check
          %p2008 = pneg %p273
        $region74: #{tpu_custom_call.1} parent=71 // pred_check_branch
          %2010 = sbr.rel (%p2008) target = $region76
        $region75: #{tpu_custom_call.1} parent=71 // pred_region
          %s2011 = sand.u32 %s258, 1
          %s2012 = scalar_lea.sflag [#allocation4], %s2011
          %s2013 = sand.u32 %s258, 1
          %s2014 = smul.addr %s2013, 128
          %s2015 = scalar_lea.vmem [#allocation3], %s2014
          %2016 = dma.done %s2012, 2048
        $region76: #{tpu_custom_call.1} parent=71 // pred_fallthru
          _
      $region72: #{tpu_custom_call.1} parent=5 // pred_fallthru
        _
    $region6: #{tpu_custom_call.1} parent=1 // loop_footer
      %s22 = sadd.s32 1, %s18
    $region7: #{tpu_custom_call.1} parent=1 // loop_footer_branch
      %17 = sbr.rel target = $region3
    $region8: #{tpu_custom_call.1} parent=1 // loop_exit
      _
    %2017 = vsyncpa [#allocation4], 1
    %s2018 = scalar_lea.sflag [#allocation4], 1
    %2019 = vsyncpa %s2018, 1

</llo_original>
